<compile_context>
chip_gen: v5e
topology: v5e:2x2
jax: 0.10.0
libtpu: 0.0.40
codegen_flags: <defaults>
</compile_context>

<pallas_src>
import jax
import jax.numpy as jnp
from jax.experimental import pallas as pl
from jax.experimental.pallas import tpu as pltpu

ALPHA = 0.2     # LeakyReLU negative slope (module arg `alpha`)
BN_EPS = 1e-5   # nn.BatchNorm1d default eps


# --------------------------------------------------------------------------- #
# Shared kernel epilogue: softmax over j, attn @ v on the VPU, fused eval-BN,
# lane-dense (Bt, 1, K*W) store.
# --------------------------------------------------------------------------- #
def _softmax_aggregate_bn_store(e, v, scale_ref, shift_ref, o_ref):
    Bt, K, W = v.shape
    # softmax over j (torch dim=2); exact divide -- the denominator is only
    # (Bt, K, 1) so an approx EUP reciprocal saves nothing and costs accuracy.
    e = e - jnp.max(e, axis=-1, keepdims=True)
    ex = jnp.exp(e)
    attn = ex / jnp.sum(ex, axis=-1, keepdims=True)
    # TODO(synk): dropout omitted (torch.dropout(train=False) is the identity).

    # Attention-weighted aggregation.  K is far below the MXU width, so a
    # batched MXU matmul is all fill/drain; do an unrolled VPU broadcast-FMA
    # over j.  Width-1 slices keep both operands in their native layouts
    # (no squeeze/expand relayouts).
    h = jnp.zeros((Bt, K, W), jnp.float32)
    for j in range(K):
        h = h + attn[:, :, j:j + 1] * v[:, j:j + 1, :]
    # TODO(synk): for K approaching the MXU width switch back to a batched MXU matmul.

    # Lane-dense output: (Bt, K, W) -> (Bt, 1, K*W) via static slices + lane
    # concat (avoids a sublane->lane reshape), then the eval-mode BatchNorm1d
    # fused as a per-flat-column affine.
    hflat = jnp.concatenate([h[:, k:k + 1, :] for k in range(K)], axis=2)
    o_ref[...] = (hflat * scale_ref[...][None] + shift_ref[...][None]).astype(o_ref.dtype)


def feat_attn_kernel_dense(v_ref, wcat_ref, blin_ref, a_ref, bias_ref,
                           scale_ref, shift_ref, o_ref):
    """Dense E-on-lanes formulation (used when E >= 128).

    v_ref     : (Bt, K, W)   f32  node windows (x.permute(0, 2, 1))
    wcat_ref  : (W, 2E)      bf16 [W1^T | W2^T]
    blin_ref  : (1, E)       f32  lin bias
    a_ref     : (1, E)       f32  attention vector a
    bias_ref  : (K, K)       f32  attention bias
    scale_ref : (1, K*W)     f32  fused eval-BN scale per flat column
    shift_ref : (1, K*W)     f32  fused eval-BN shift per flat column
    o_ref     : (Bt, 1, K*W) lane-dense BN(attention @ V)
    """
    Bt, K, W = v_ref.shape
    E = a_ref.shape[-1]

    v = v_ref[...]
    # One fused MXU matmul (bf16 operands, f32 accumulation) for both halves of
    # the linear transform: [p | q] = v_flat @ [W1^T | W2^T].
    pq = jnp.dot(v.reshape(Bt * K, W).astype(jnp.bfloat16), wcat_ref[...],
                 preferred_element_type=jnp.float32)              # (Bt*K, 2E)
    p = (pq[:, :E] + blin_ref[...]).reshape(Bt, K, E)             # bias folded once per i
    q = pq[:, E:].reshape(Bt, K, E)

    # GATv2 pairwise pre-activation with E on the lane axis.
    z = p[:, :, None, :] + q[:, None, :, :]                       # (Bt, K, K, E)
    z = jnp.where(z > 0, z, ALPHA * z)                            # LeakyReLU, f32 VPU
    # TODO(synk): tile the j axis for production K so the per-element (K, K, E)
    # slab stays within the vreg file / VMEM instead of spilling.

    # a-reduction as a VPU multiply + lane (XLU) reduce -- no lane-sparse
    # (K*E, K) kron matmul, no K-times redundant MXU MACs.
    e = jnp.sum(z * a_ref[...][None, None, :, :], axis=-1)        # (Bt, K, K)
    e = e + bias_ref[...][None]

    _softmax_aggregate_bn_store(e, v, scale_ref, shift_ref, o_ref)


def feat_attn_kernel_kron(v_ref, vflat_ref, w1t_ref, w2k_ref, blin_ref, ak_ref,
                          bias_ref, scale_ref, shift_ref, o_ref):
    """Lane-dense fused-(j, e) formulation (used when E < 128).

    Keeps the pairwise score tensor lane-dense as (Bt, K, K*E) when E alone
    would waste most of every vreg, at the cost of K-times redundant MXU MACs
    (acceptable only at small K*E; the dense path takes over once E >= 128).

    v_ref     : (Bt, K, W)     f32  node windows
    vflat_ref : (Bt, K*W)      bf16 same data, one lane-dense row per batch element
    w1t_ref   : (W, K*E)       bf16 W1^T tiled K times along columns
    w2k_ref   : (K*W, K*E)     bf16 kron(I_K, W2^T) (puts j on the lane axis)
    blin_ref  : (1, K*E)       f32  lin bias tiled K times
    ak_ref    : (K*E, K)       bf16 kron(I_K, a) (a-reduction as an MXU matmul)
    bias_ref  : (K, K)         f32  attention bias
    scale_ref : (1, K*W)       f32  fused eval-BN scale
    shift_ref : (1, K*W)       f32  fused eval-BN shift
    o_ref     : (Bt, 1, K*W)   lane-dense BN(attention @ V)
    """
    Bt, K, W = v_ref.shape
    KE = ak_ref.shape[0]

    v = v_ref[...]
    # p_t[(b,i), j*E+e] = (v_i @ W1^T)[e] + b_lin[e]
    p_t = jnp.dot(v.reshape(Bt * K, W).astype(jnp.bfloat16), w1t_ref[...],
                  preferred_element_type=jnp.float32) + blin_ref[...]     # (Bt*K, K*E)
    # q_ld[b, j*E+e] = (v_j @ W2^T)[e]  (block-diagonal weight lands j on lanes)
    q_ld = jnp.dot(vflat_ref[...], w2k_ref[...],
                   preferred_element_type=jnp.float32)                    # (Bt, K*E)

    z = p_t.reshape(Bt, K, KE) + q_ld[:, None, :]                         # (Bt, K, K*E)
    z = jnp.where(z > 0, z, ALPHA * z)                                    # LeakyReLU

    # a-reduction on the MXU (bf16 operands, f32 accumulation).
    e = jnp.dot(z.reshape(Bt * K, KE).astype(jnp.bfloat16), ak_ref[...],
                preferred_element_type=jnp.float32)
    e = e.reshape(Bt, K, K) + bias_ref[...][None]

    _softmax_aggregate_bn_store(e, v, scale_ref, shift_ref, o_ref)


# --------------------------------------------------------------------------- #
# Generation-aware tiling helpers.
# --------------------------------------------------------------------------- #
def _vmem_capacity_bytes():
    """Physical per-TensorCore VMEM; conservative v7x default if the query fails."""
    try:
        cap = getattr(pltpu.get_tpu_info(), "vmem_capacity_bytes", None)
        if cap:
            return int(cap)
    except Exception:
        pass
    return 64 << 20


def _pick_batch_tile(B, K, W, E, dense, weight_bytes, vmem_cap):
    """Largest batch tile whose real resident footprint fits a VMEM budget.

    Accounts for double-buffered weight blocks, double-buffered activation /
    output tiles and the live f32 intermediates of one invocation (dominated by
    the pairwise-score tensors).  Prefers Bt with Bt*K a multiple of 128 (MXU
    rows) and keeps >= 2 grid steps when that costs nothing (megacore); there
    is no artificial B//2 cap for single-TensorCore chips.
    """
    budget = int(0.35 * vmem_cap)
    fixed = 2 * weight_bytes                               # double-buffered weights
    act = 2 * (K * W * 4 + K * W * 4)                      # v tile + out tile, double-buffered
    if dense:
        live = 4 * (2 * K * K * E + 2 * K * E + 3 * K * K + 2 * K * W)
    else:
        act += 2 * K * W * 2                               # extra bf16 vflat stream
        live = 4 * (3 * K * K * E + K * E + 3 * K * K + 2 * K * W)
    per_b = act + live
    cap = max(1, (budget - fixed) // per_b)

    def legal(bt):
        # vflat block (bt, K*W): bt sits on a tiled (sublane) axis, so it must be
        # a multiple of 8 unless it spans the whole batch.
        return B % bt == 0 and (bt % 8 == 0 or bt == B)

    cands = [bt for bt in range(1, B + 1) if legal(bt) and bt <= cap]
    if not cands:
        return next(bt for bt in range(1, B + 1) if legal(bt))
    aligned = [bt for bt in cands if (bt * K) % 128 == 0]  # fill MXU rows
    pool = aligned or cands
    multi = [bt for bt in pool if B // bt >= 2]            # let multi-TC chips split the grid
    pool = multi or pool
    return max(pool)


# --------------------------------------------------------------------------- #
# Wrapper.
# --------------------------------------------------------------------------- #
def feature_attention_layer(x, params):
    """x: (B, W, K) float32. Returns (B, W, K), matching the PyTorch forward (eval)."""
    B, W, K = x.shape
    E = 2 * W                                    # embed_dim (use_gatv2=True doubles it)

    v = jnp.transpose(x, (0, 2, 1))              # (B, K, W) -- x.permute(0, 2, 1)

    w = params["lin_w"]                          # (E, 2W) torch Linear weight (out, in)
    w1t = jnp.transpose(w[:, :W])                # (W, E) acts on v_i
    w2t = jnp.transpose(w[:, W:])                # (W, E) acts on v_j
    bias = params["bias"]                        # (K, K)

    # Eval-mode BatchNorm1d folded to a per-flat-column affine.  h (B, K, W) is
    # flattened row-major to (-1, K), so flat column k*W + w normalizes with BN
    # channel (k*W + w) % K -- the original code's quirk, reproduced exactly.
    col = (jnp.arange(K * W) % K).reshape(1, K * W)
    g = params["bn_gamma"] * jax.lax.rsqrt(params["bn_var"] + BN_EPS)
    scale_flat = g[col]                                              # (1, K*W)
    shift_flat = (params["bn_beta"] - params["bn_mean"] * g)[col]    # (1, K*W)

    vmem_cap = _vmem_capacity_bytes()
    dense = E >= 128

    if dense:
        wcat = jnp.concatenate([w1t, w2t], axis=1).astype(jnp.bfloat16)   # (W, 2E)
        blin = params["lin_b"].reshape(1, E)
        a_vec = params["a"].reshape(1, E)
        weight_bytes = (wcat.size * 2
                        + (blin.size + a_vec.size + bias.size + 2 * K * W) * 4)
        Bt = _pick_batch_tile(B, K, W, E, True, weight_bytes, vmem_cap)
        kernel = feat_attn_kernel_dense
        operands = (v, wcat, blin, a_vec, bias, scale_flat, shift_flat)
        in_specs = [
            pl.BlockSpec((Bt, K, W), lambda b: (b, 0, 0)),
            pl.BlockSpec((W, 2 * E), lambda b: (0, 0)),
            pl.BlockSpec((1, E), lambda b: (0, 0)),
            pl.BlockSpec((1, E), lambda b: (0, 0)),
            pl.BlockSpec((K, K), lambda b: (0, 0)),
            pl.BlockSpec((1, K * W), lambda b: (0, 0)),
            pl.BlockSpec((1, K * W), lambda b: (0, 0)),
        ]
    else:
        KE = K * E
        # TODO(synk): deliberate 2x activation read (v and vflat are the same
        # bytes); deriving vflat in-kernel would need a sublane->lane reshape.
        vflat = v.reshape(B, K * W).astype(jnp.bfloat16)
        w1t_tiled = jnp.tile(w1t, (1, K)).astype(jnp.bfloat16)                    # (W, K*E)
        w2kron = jnp.kron(jnp.eye(K, dtype=w2t.dtype), w2t).astype(jnp.bfloat16)  # (K*W, K*E)
        blin_tiled = jnp.tile(params["lin_b"].reshape(1, E), (1, K))              # (1, K*E)
        akron = jnp.kron(jnp.eye(K, dtype=x.dtype),
                         params["a"].reshape(E, 1)).astype(jnp.bfloat16)          # (K*E, K)
        weight_bytes = ((w1t_tiled.size + w2kron.size + akron.size) * 2
                        + (blin_tiled.size + bias.size + 2 * K * W) * 4)
        Bt = _pick_batch_tile(B, K, W, E, False, weight_bytes, vmem_cap)
        kernel = feat_attn_kernel_kron
        operands = (v, vflat, w1t_tiled, w2kron, blin_tiled, akron, bias,
                    scale_flat, shift_flat)
        in_specs = [
            pl.BlockSpec((Bt, K, W), lambda b: (b, 0, 0)),
            pl.BlockSpec((Bt, K * W), lambda b: (b, 0)),
            pl.BlockSpec((W, KE), lambda b: (0, 0)),
            pl.BlockSpec((K * W, KE), lambda b: (0, 0)),
            pl.BlockSpec((1, KE), lambda b: (0, 0)),
            pl.BlockSpec((KE, K), lambda b: (0, 0)),
            pl.BlockSpec((K, K), lambda b: (0, 0)),
            pl.BlockSpec((1, K * W), lambda b: (0, 0)),
            pl.BlockSpec((1, K * W), lambda b: (0, 0)),
        ]
    # TODO(synk): the grid-invariant weight operands could request
    # pipeline_mode=pl.Buffered(1) to halve their VMEM footprint on v7x.

    vmem_limit = int(min(0.6 * vmem_cap, 96 * 1024 * 1024))

    hflat = pl.pallas_call(
        kernel,
        out_shape=jax.ShapeDtypeStruct((B, 1, K * W), x.dtype),
        grid_spec=pltpu.PrefetchScalarGridSpec(
            num_scalar_prefetch=0,
            grid=(B // Bt,),
            in_specs=in_specs,
            out_specs=pl.BlockSpec((Bt, 1, K * W), lambda b: (b, 0, 0)),
        ),
        compiler_params=pltpu.CompilerParams(
            dimension_semantics=("parallel",),
            vmem_limit_bytes=vmem_limit,
        ),
    )(*operands)

    # Raw row-major reinterpretation: the PyTorch h.permute(0, 2, 1) result is
    # discarded, so view(-1, W, K) sees the flat (b, k, w)-ordered buffer.
    return hflat.reshape(-1, W, K)


# --------------------------------------------------------------------------- #
# Pure-JAX mirror of the PyTorch forward (eval mode) for validation.
# --------------------------------------------------------------------------- #
def reference(x, params):
    B, W, K = x.shape
    v = jnp.transpose(x, (0, 2, 1))                                    # (B, K, W)
    a_input = jnp.concatenate(
        [jnp.repeat(v[:, :, None, :], K, axis=2),                      # v_i
         jnp.repeat(v[:, None, :, :], K, axis=1)], axis=-1)            # v_j -> (B,K,K,2W)
    z = a_input @ params["lin_w"].T + params["lin_b"]
    z = jnp.where(z > 0, z, ALPHA * z)
    e = (z @ params["a"].reshape(-1, 1))[..., 0] + params["bias"]
    attn = jax.nn.softmax(e, axis=2)
    h = attn @ v                                                       # (B, K, W)
    hr = h.reshape(-1, K)
    hbn = (hr - params["bn_mean"]) * jax.lax.rsqrt(params["bn_var"] + BN_EPS) \
          * params["bn_gamma"] + params["bn_beta"]
    return hbn.reshape(-1, W, K)


def make_params(key, n_features, window_size):
    K, W = n_features, window_size
    E = 2 * W  # embed_dim with use_gatv2=True
    ks = jax.random.split(key, 7)
    return {
        "lin_w": jax.random.normal(ks[0], (E, 2 * W), jnp.float32) * (1.0 / jnp.sqrt(2.0 * W)),
        "lin_b": jax.random.normal(ks[1], (E,), jnp.float32) * 0.05,
        "a": jax.random.normal(ks[2], (E, 1), jnp.float32) * (1.414 / jnp.sqrt(E)),
        "bias": jax.random.normal(ks[3], (K, K), jnp.float32) * 0.05,
        "bn_gamma": 1.0 + 0.1 * jax.random.normal(ks[4], (K,), jnp.float32),
        "bn_beta": 0.1 * jax.random.normal(ks[5], (K,), jnp.float32),
        "bn_mean": 0.1 * jax.random.normal(ks[6], (K,), jnp.float32),
        "bn_var": jnp.ones((K,), jnp.float32),
    }


if __name__ == "__main__":
    key = jax.random.PRNGKey(0)
    # (B, W, K): the first shape exercises the E<128 lane-dense kron path, the
    # second (E = 2*64 = 128) exercises the dense E-on-lanes path.
    for (B, W, K) in [(32, 16, 8), (32, 64, 8)]:
        key, kx, kp = jax.random.split(key, 3)
        x = jax.random.normal(kx, (B, W, K), jnp.float32)
        params = make_params(kp, K, W)

        out = jax.block_until_ready(feature_attention_layer(x, params))
        assert out.shape == (B, W, K), out.shape

        ref = reference(x, params)
        # bf16 MXU operands (f32 accumulation) bound the deviation from the
        # all-f32 reference; softmax/aggregation/BN stay f32 and the softmax
        # normalization uses an exact divide.
        max_err = float(jnp.max(jnp.abs(out - ref)))
        mean_err = float(jnp.mean(jnp.abs(out - ref)))
        assert max_err < 1e-1 and mean_err < 1e-2, (max_err, mean_err)
    print("KERNEL_OK")
</pallas_src>

<mosaic_0001>
module attributes {stable_mosaic.version = 11 : i64} {
  func.func @feat_attn_kernel_kron(%arg0: i32, %arg1: memref<16x8x16xf32, #tpu.memory_space<vmem>>, %arg2: memref<16x128xbf16, #tpu.memory_space<vmem>>, %arg3: memref<16x256xbf16, #tpu.memory_space<vmem>>, %arg4: memref<128x256xbf16, #tpu.memory_space<vmem>>, %arg5: memref<1x256xf32, #tpu.memory_space<vmem>>, %arg6: memref<256x8xbf16, #tpu.memory_space<vmem>>, %arg7: memref<8x8xf32, #tpu.memory_space<vmem>>, %arg8: memref<1x128xf32, #tpu.memory_space<vmem>>, %arg9: memref<1x128xf32, #tpu.memory_space<vmem>>, %arg10: memref<16x1x128xf32, #tpu.memory_space<vmem>>) attributes {dimension_semantics = [#tpu.dimension_semantics<parallel>], iteration_bounds = array<i64: 2>, scalar_prefetch = 0 : i64, scratch_operands = 0 : i64, tpu.core_type = #tpu.core_type<tc>, window_params = [{transform_indices = @transform_0, window_bounds = array<i64: 16, 8, 16>}, {transform_indices = @transform_1, window_bounds = array<i64: 16, 128>}, {pipeline_mode = #tpu.pipeline_mode<synchronous>, transform_indices = @transform_2, window_bounds = array<i64: 16, 256>}, {pipeline_mode = #tpu.pipeline_mode<synchronous>, transform_indices = @transform_3, window_bounds = array<i64: 128, 256>}, {pipeline_mode = #tpu.pipeline_mode<synchronous>, transform_indices = @transform_4, window_bounds = array<i64: 1, 256>}, {pipeline_mode = #tpu.pipeline_mode<synchronous>, transform_indices = @transform_5, window_bounds = array<i64: 256, 8>}, {pipeline_mode = #tpu.pipeline_mode<synchronous>, transform_indices = @transform_6, window_bounds = array<i64: 8, 8>}, {pipeline_mode = #tpu.pipeline_mode<synchronous>, transform_indices = @transform_7, window_bounds = array<i64: 1, 128>}, {pipeline_mode = #tpu.pipeline_mode<synchronous>, transform_indices = @transform_8, window_bounds = array<i64: 1, 128>}, {transform_indices = @transform_9, window_bounds = array<i64: 16, 1, 128>}]} {
    %c0 = arith.constant 0 : index
    %c0_0 = arith.constant 0 : index
    %c0_1 = arith.constant 0 : index
    %0 = vector.load %arg1[%c0, %c0_0, %c0_1] : memref<16x8x16xf32, #tpu.memory_space<vmem>>, vector<16x8x16xf32>
    %1 = vector.shape_cast %0 : vector<16x8x16xf32> to vector<128x16xf32>
    %2 = arith.truncf %1 : vector<128x16xf32> to vector<128x16xbf16>
    %c0_2 = arith.constant 0 : index
    %c0_3 = arith.constant 0 : index
    %3 = vector.load %arg3[%c0_2, %c0_3] : memref<16x256xbf16, #tpu.memory_space<vmem>>, vector<16x256xbf16>
    %cst = arith.constant dense<0.000000e+00> : vector<128x256xf32>
    %4 = tpu.matmul %2, %3, %cst {dimension_numbers = #tpu.dot_dimension_numbers<[1], [0], [0], [1], [0, 0, 1, 1], [], []>} : vector<128x16xbf16>, vector<16x256xbf16>, vector<128x256xf32> -> vector<128x256xf32>
    %c0_4 = arith.constant 0 : index
    %c0_5 = arith.constant 0 : index
    %5 = vector.load %arg5[%c0_4, %c0_5] : memref<1x256xf32, #tpu.memory_space<vmem>>, vector<1x256xf32>
    %6 = vector.broadcast %5 : vector<1x256xf32> to vector<128x256xf32>
    %7 = arith.addf %4, %6 : vector<128x256xf32>
    %c0_6 = arith.constant 0 : index
    %c0_7 = arith.constant 0 : index
    %8 = vector.load %arg2[%c0_6, %c0_7] : memref<16x128xbf16, #tpu.memory_space<vmem>>, vector<16x128xbf16>
    %c0_8 = arith.constant 0 : index
    %c0_9 = arith.constant 0 : index
    %9 = vector.load %arg4[%c0_8, %c0_9] : memref<128x256xbf16, #tpu.memory_space<vmem>>, vector<128x256xbf16>
    %cst_10 = arith.constant dense<0.000000e+00> : vector<16x256xf32>
    %10 = tpu.matmul %8, %9, %cst_10 {dimension_numbers = #tpu.dot_dimension_numbers<[1], [0], [0], [1], [0, 0, 1, 1], [], []>} : vector<16x128xbf16>, vector<128x256xbf16>, vector<16x256xf32> -> vector<16x256xf32>
    %11 = vector.shape_cast %7 : vector<128x256xf32> to vector<16x8x256xf32>
    %12 = vector.shape_cast %10 : vector<16x256xf32> to vector<16x1x256xf32>
    %13 = vector.broadcast %12 : vector<16x1x256xf32> to vector<16x8x256xf32>
    %14 = arith.addf %11, %13 : vector<16x8x256xf32>
    %cst_11 = arith.constant 0.000000e+00 : f32
    %15 = vector.broadcast %cst_11 : f32 to vector<16x8x256xf32>
    %16 = arith.cmpf ogt, %14, %15 : vector<16x8x256xf32>
    %cst_12 = arith.constant 2.000000e-01 : f32
    %17 = vector.broadcast %cst_12 : f32 to vector<16x8x256xf32>
    %18 = arith.mulf %17, %14 : vector<16x8x256xf32>
    %19 = arith.select %16, %14, %18 : vector<16x8x256xi1>, vector<16x8x256xf32>
    %20 = vector.shape_cast %19 : vector<16x8x256xf32> to vector<128x256xf32>
    %21 = arith.truncf %20 : vector<128x256xf32> to vector<128x256xbf16>
    %c0_13 = arith.constant 0 : index
    %c0_14 = arith.constant 0 : index
    %22 = vector.load %arg6[%c0_13, %c0_14] : memref<256x8xbf16, #tpu.memory_space<vmem>>, vector<256x8xbf16>
    %cst_15 = arith.constant dense<0.000000e+00> : vector<128x8xf32>
    %23 = tpu.matmul %21, %22, %cst_15 {dimension_numbers = #tpu.dot_dimension_numbers<[1], [0], [0], [1], [0, 0, 1, 1], [], []>} : vector<128x256xbf16>, vector<256x8xbf16>, vector<128x8xf32> -> vector<128x8xf32>
    %24 = vector.shape_cast %23 : vector<128x8xf32> to vector<16x8x8xf32>
    %c0_16 = arith.constant 0 : index
    %c0_17 = arith.constant 0 : index
    %25 = vector.load %arg7[%c0_16, %c0_17] : memref<8x8xf32, #tpu.memory_space<vmem>>, vector<8x8xf32>
    %26 = vector.shape_cast %25 : vector<8x8xf32> to vector<1x8x8xf32>
    %27 = vector.broadcast %26 : vector<1x8x8xf32> to vector<16x8x8xf32>
    %28 = arith.addf %24, %27 : vector<16x8x8xf32>
    %cst_18 = arith.constant dense<0xFF800000> : vector<16x8xf32>
    %29 = vector.multi_reduction <maximumf>, %28, %cst_18 [2] : vector<16x8x8xf32> to vector<16x8xf32>
    %30 = vector.shape_cast %29 : vector<16x8xf32> to vector<16x8x1xf32>
    %31 = vector.broadcast %30 : vector<16x8x1xf32> to vector<16x8x8xf32>
    %32 = arith.subf %28, %31 : vector<16x8x8xf32>
    %33 = math.exp %32 : vector<16x8x8xf32>
    %cst_19 = arith.constant dense<0.000000e+00> : vector<16x8xf32>
    %34 = vector.multi_reduction <add>, %33, %cst_19 [2] : vector<16x8x8xf32> to vector<16x8xf32>
    %35 = vector.shape_cast %34 : vector<16x8xf32> to vector<16x8x1xf32>
    %36 = vector.broadcast %35 : vector<16x8x1xf32> to vector<16x8x8xf32>
    %37 = arith.divf %33, %36 : vector<16x8x8xf32>
    %cst_20 = arith.constant 0.000000e+00 : f32
    %38 = vector.broadcast %cst_20 : f32 to vector<16x8x16xf32>
    %39 = vector.extract_strided_slice %37 {offsets = [0, 0, 0], sizes = [16, 8, 1], strides = [1, 1, 1]} : vector<16x8x8xf32> to vector<16x8x1xf32>
    %40 = vector.extract_strided_slice %0 {offsets = [0, 0, 0], sizes = [16, 1, 16], strides = [1, 1, 1]} : vector<16x8x16xf32> to vector<16x1x16xf32>
    %41 = vector.broadcast %39 : vector<16x8x1xf32> to vector<16x8x16xf32>
    %42 = vector.broadcast %40 : vector<16x1x16xf32> to vector<16x8x16xf32>
    %43 = arith.mulf %41, %42 : vector<16x8x16xf32>
    %44 = arith.addf %38, %43 : vector<16x8x16xf32>
    %45 = vector.extract_strided_slice %37 {offsets = [0, 0, 1], sizes = [16, 8, 1], strides = [1, 1, 1]} : vector<16x8x8xf32> to vector<16x8x1xf32>
    %46 = vector.extract_strided_slice %0 {offsets = [0, 1, 0], sizes = [16, 1, 16], strides = [1, 1, 1]} : vector<16x8x16xf32> to vector<16x1x16xf32>
    %47 = vector.broadcast %45 : vector<16x8x1xf32> to vector<16x8x16xf32>
    %48 = vector.broadcast %46 : vector<16x1x16xf32> to vector<16x8x16xf32>
    %49 = arith.mulf %47, %48 : vector<16x8x16xf32>
    %50 = arith.addf %44, %49 : vector<16x8x16xf32>
    %51 = vector.extract_strided_slice %37 {offsets = [0, 0, 2], sizes = [16, 8, 1], strides = [1, 1, 1]} : vector<16x8x8xf32> to vector<16x8x1xf32>
    %52 = vector.extract_strided_slice %0 {offsets = [0, 2, 0], sizes = [16, 1, 16], strides = [1, 1, 1]} : vector<16x8x16xf32> to vector<16x1x16xf32>
    %53 = vector.broadcast %51 : vector<16x8x1xf32> to vector<16x8x16xf32>
    %54 = vector.broadcast %52 : vector<16x1x16xf32> to vector<16x8x16xf32>
    %55 = arith.mulf %53, %54 : vector<16x8x16xf32>
    %56 = arith.addf %50, %55 : vector<16x8x16xf32>
    %57 = vector.extract_strided_slice %37 {offsets = [0, 0, 3], sizes = [16, 8, 1], strides = [1, 1, 1]} : vector<16x8x8xf32> to vector<16x8x1xf32>
    %58 = vector.extract_strided_slice %0 {offsets = [0, 3, 0], sizes = [16, 1, 16], strides = [1, 1, 1]} : vector<16x8x16xf32> to vector<16x1x16xf32>
    %59 = vector.broadcast %57 : vector<16x8x1xf32> to vector<16x8x16xf32>
    %60 = vector.broadcast %58 : vector<16x1x16xf32> to vector<16x8x16xf32>
    %61 = arith.mulf %59, %60 : vector<16x8x16xf32>
    %62 = arith.addf %56, %61 : vector<16x8x16xf32>
    %63 = vector.extract_strided_slice %37 {offsets = [0, 0, 4], sizes = [16, 8, 1], strides = [1, 1, 1]} : vector<16x8x8xf32> to vector<16x8x1xf32>
    %64 = vector.extract_strided_slice %0 {offsets = [0, 4, 0], sizes = [16, 1, 16], strides = [1, 1, 1]} : vector<16x8x16xf32> to vector<16x1x16xf32>
    %65 = vector.broadcast %63 : vector<16x8x1xf32> to vector<16x8x16xf32>
    %66 = vector.broadcast %64 : vector<16x1x16xf32> to vector<16x8x16xf32>
    %67 = arith.mulf %65, %66 : vector<16x8x16xf32>
    %68 = arith.addf %62, %67 : vector<16x8x16xf32>
    %69 = vector.extract_strided_slice %37 {offsets = [0, 0, 5], sizes = [16, 8, 1], strides = [1, 1, 1]} : vector<16x8x8xf32> to vector<16x8x1xf32>
    %70 = vector.extract_strided_slice %0 {offsets = [0, 5, 0], sizes = [16, 1, 16], strides = [1, 1, 1]} : vector<16x8x16xf32> to vector<16x1x16xf32>
    %71 = vector.broadcast %69 : vector<16x8x1xf32> to vector<16x8x16xf32>
    %72 = vector.broadcast %70 : vector<16x1x16xf32> to vector<16x8x16xf32>
    %73 = arith.mulf %71, %72 : vector<16x8x16xf32>
    %74 = arith.addf %68, %73 : vector<16x8x16xf32>
    %75 = vector.extract_strided_slice %37 {offsets = [0, 0, 6], sizes = [16, 8, 1], strides = [1, 1, 1]} : vector<16x8x8xf32> to vector<16x8x1xf32>
    %76 = vector.extract_strided_slice %0 {offsets = [0, 6, 0], sizes = [16, 1, 16], strides = [1, 1, 1]} : vector<16x8x16xf32> to vector<16x1x16xf32>
    %77 = vector.broadcast %75 : vector<16x8x1xf32> to vector<16x8x16xf32>
    %78 = vector.broadcast %76 : vector<16x1x16xf32> to vector<16x8x16xf32>
    %79 = arith.mulf %77, %78 : vector<16x8x16xf32>
    %80 = arith.addf %74, %79 : vector<16x8x16xf32>
    %81 = vector.extract_strided_slice %37 {offsets = [0, 0, 7], sizes = [16, 8, 1], strides = [1, 1, 1]} : vector<16x8x8xf32> to vector<16x8x1xf32>
    %82 = vector.extract_strided_slice %0 {offsets = [0, 7, 0], sizes = [16, 1, 16], strides = [1, 1, 1]} : vector<16x8x16xf32> to vector<16x1x16xf32>
    %83 = vector.broadcast %81 : vector<16x8x1xf32> to vector<16x8x16xf32>
    %84 = vector.broadcast %82 : vector<16x1x16xf32> to vector<16x8x16xf32>
    %85 = arith.mulf %83, %84 : vector<16x8x16xf32>
    %86 = arith.addf %80, %85 : vector<16x8x16xf32>
    %87 = vector.extract_strided_slice %86 {offsets = [0, 0, 0], sizes = [16, 1, 16], strides = [1, 1, 1]} : vector<16x8x16xf32> to vector<16x1x16xf32>
    %88 = vector.extract_strided_slice %86 {offsets = [0, 1, 0], sizes = [16, 1, 16], strides = [1, 1, 1]} : vector<16x8x16xf32> to vector<16x1x16xf32>
    %89 = vector.extract_strided_slice %86 {offsets = [0, 2, 0], sizes = [16, 1, 16], strides = [1, 1, 1]} : vector<16x8x16xf32> to vector<16x1x16xf32>
    %90 = vector.extract_strided_slice %86 {offsets = [0, 3, 0], sizes = [16, 1, 16], strides = [1, 1, 1]} : vector<16x8x16xf32> to vector<16x1x16xf32>
    %91 = vector.extract_strided_slice %86 {offsets = [0, 4, 0], sizes = [16, 1, 16], strides = [1, 1, 1]} : vector<16x8x16xf32> to vector<16x1x16xf32>
    %92 = vector.extract_strided_slice %86 {offsets = [0, 5, 0], sizes = [16, 1, 16], strides = [1, 1, 1]} : vector<16x8x16xf32> to vector<16x1x16xf32>
    %93 = vector.extract_strided_slice %86 {offsets = [0, 6, 0], sizes = [16, 1, 16], strides = [1, 1, 1]} : vector<16x8x16xf32> to vector<16x1x16xf32>
    %94 = vector.extract_strided_slice %86 {offsets = [0, 7, 0], sizes = [16, 1, 16], strides = [1, 1, 1]} : vector<16x8x16xf32> to vector<16x1x16xf32>
    %95 = tpu.concatenate %87, %88, %89, %90, %91, %92, %93, %94 in 2 : vector<16x1x16xf32>, vector<16x1x16xf32>, vector<16x1x16xf32>, vector<16x1x16xf32>, vector<16x1x16xf32>, vector<16x1x16xf32>, vector<16x1x16xf32>, vector<16x1x16xf32> -> vector<16x1x128xf32>
    %c0_21 = arith.constant 0 : index
    %c0_22 = arith.constant 0 : index
    %96 = vector.load %arg8[%c0_21, %c0_22] : memref<1x128xf32, #tpu.memory_space<vmem>>, vector<1x128xf32>
    %97 = vector.shape_cast %96 : vector<1x128xf32> to vector<1x1x128xf32>
    %98 = vector.broadcast %97 : vector<1x1x128xf32> to vector<16x1x128xf32>
    %99 = arith.mulf %95, %98 : vector<16x1x128xf32>
    %c0_23 = arith.constant 0 : index
    %c0_24 = arith.constant 0 : index
    %100 = vector.load %arg9[%c0_23, %c0_24] : memref<1x128xf32, #tpu.memory_space<vmem>>, vector<1x128xf32>
    %101 = vector.shape_cast %100 : vector<1x128xf32> to vector<1x1x128xf32>
    %102 = vector.broadcast %101 : vector<1x1x128xf32> to vector<16x1x128xf32>
    %103 = arith.addf %99, %102 : vector<16x1x128xf32>
    %c0_25 = arith.constant 0 : index
    %c0_26 = arith.constant 0 : index
    %c0_27 = arith.constant 0 : index
    %104 = vector.load %arg10[%c0_25, %c0_26, %c0_27] : memref<16x1x128xf32, #tpu.memory_space<vmem>>, vector<16x1x128xf32>
    tpu.vector_store %arg10[%c0_25, %c0_26, %c0_27], %103 {strides = array<i32>} : memref<16x1x128xf32, #tpu.memory_space<vmem>>, vector<16x1x128xf32>,
    return
  }
  func.func @transform_0(%arg0: i32) -> (i32, i32, i32) {
    %c0_i32 = arith.constant 0 : i32
    %c0_i32_0 = arith.constant 0 : i32
    %c0_i32_1 = arith.constant 0 : i32
    return %arg0, %c0_i32, %c0_i32_0 : i32, i32, i32
  }
  func.func @transform_1(%arg0: i32) -> (i32, i32) {
    %c0_i32 = arith.constant 0 : i32
    %c0_i32_0 = arith.constant 0 : i32
    return %arg0, %c0_i32 : i32, i32
  }
  func.func @transform_2(%arg0: i32) -> (i32, i32) {
    %c0_i32 = arith.constant 0 : i32
    %c0_i32_0 = arith.constant 0 : i32
    %c0_i32_1 = arith.constant 0 : i32
    return %c0_i32, %c0_i32_0 : i32, i32
  }
  func.func @transform_3(%arg0: i32) -> (i32, i32) {
    %c0_i32 = arith.constant 0 : i32
    %c0_i32_0 = arith.constant 0 : i32
    %c0_i32_1 = arith.constant 0 : i32
    return %c0_i32, %c0_i32_0 : i32, i32
  }
  func.func @transform_4(%arg0: i32) -> (i32, i32) {
    %c0_i32 = arith.constant 0 : i32
    %c0_i32_0 = arith.constant 0 : i32
    %c0_i32_1 = arith.constant 0 : i32
    return %c0_i32, %c0_i32_0 : i32, i32
  }
  func.func @transform_5(%arg0: i32) -> (i32, i32) {
    %c0_i32 = arith.constant 0 : i32
    %c0_i32_0 = arith.constant 0 : i32
    %c0_i32_1 = arith.constant 0 : i32
    return %c0_i32, %c0_i32_0 : i32, i32
  }
  func.func @transform_6(%arg0: i32) -> (i32, i32) {
    %c0_i32 = arith.constant 0 : i32
    %c0_i32_0 = arith.constant 0 : i32
    %c0_i32_1 = arith.constant 0 : i32
    return %c0_i32, %c0_i32_0 : i32, i32
  }
  func.func @transform_7(%arg0: i32) -> (i32, i32) {
    %c0_i32 = arith.constant 0 : i32
    %c0_i32_0 = arith.constant 0 : i32
    %c0_i32_1 = arith.constant 0 : i32
    return %c0_i32, %c0_i32_0 : i32, i32
  }
  func.func @transform_8(%arg0: i32) -> (i32, i32) {
    %c0_i32 = arith.constant 0 : i32
    %c0_i32_0 = arith.constant 0 : i32
    %c0_i32_1 = arith.constant 0 : i32
    return %c0_i32, %c0_i32_0 : i32, i32
  }
  func.func @transform_9(%arg0: i32) -> (i32, i32, i32) {
    %c0_i32 = arith.constant 0 : i32
    %c0_i32_0 = arith.constant 0 : i32
    %c0_i32_1 = arith.constant 0 : i32
    return %arg0, %c0_i32, %c0_i32_0 : i32, i32, i32
  }
}

</mosaic_0001>

<llo_original>
// kernel: tpu_custom_call.1
$region0: #{tpu_custom_call.1}
  #allocation0 [shape = 'u32[]', space=smem, size = 0x4, offset = 0x4, fixed_abs, tag = 'smem constant byte address 0x4 - core index']
  #allocation1 [shape = 'u32[72,128]{1,0:T(1,128)}', space=vmem, size = 0x9000, scoped, tag = 'internal scratch']
  %s0 = inlined_call_operand.vmem [shape: f32[32,8,16], index: 0, kind: input, shape index: {}]
  %s1 = inlined_call_operand.vmem [shape: bf16[32,128], index: 1, kind: input, shape index: {}]
  %s2 = inlined_call_operand.vmem [shape: bf16[16,256], index: 2, kind: input, shape index: {}]
  %s3 = inlined_call_operand.vmem [shape: bf16[128,256], index: 3, kind: input, shape index: {}]
  %s4 = inlined_call_operand.vmem [shape: f32[1,256], index: 4, kind: input, shape index: {}]
  %s5 = inlined_call_operand.vmem [shape: bf16[256,8], index: 5, kind: input, shape index: {}]
  %s6 = inlined_call_operand.vmem [shape: f32[8,8], index: 6, kind: input, shape index: {}]
  %s7 = inlined_call_operand.vmem [shape: f32[1,128], index: 7, kind: input, shape index: {}]
  %s8 = inlined_call_operand.vmem [shape: f32[1,128], index: 8, kind: input, shape index: {}]
  %s9 = inlined_call_operand.hbm [shape: f32[32,1,128], index: 9, kind: output, shape index: {}]
  %s10 = sld [smem:[#allocation0]]
  $region69: #{tpu_custom_call.1} parent=0
    _
  %s12 = ssub.s32 1, %s10
  %s13 = scalar_select 0, %s12, %s10
  $region1: #{tpu_custom_call.1} parent=0
    #allocation2 [shape = 'u8[16384]{0}', space=vmem, size = 0x4000, scoped, tag = 'output window, operand 0']
    #allocation3 [shape = 's32[2]{0}', space=sflag, size = 0x8, scoped, tag = 'scoped memory for tpu_custom_call.1']
    %14 = vsyncpa [#allocation3], 0
    %s15 = scalar_lea.sflag [#allocation3], 1
    %16 = vsyncpa %s15, 0
    loop: start=0, step=1, limit=4
    $region2: #{tpu_custom_call.1} parent=1 // loop_pre_header
      _
    $region3: #{tpu_custom_call.1} parent=1 // loop_header
      %s18 = sphi 0, %s22
      %p19 = scmp.ge.s32.totalorder %s18, 4
      %s28 = sphi 0, %s30
      %s31 = sphi 0, %s28
      %s32 = sphi 0, %s31
      %s48 = sphi 0, %s32
      %s54 = sphi 0, %s56
      %s57 = sphi 0, %s54
      %s58 = sphi 0, %s57
      %s74 = sphi 0, %s58
      %s78 = sphi 0, %s78
      %s80 = sphi 0, %s78
      %s81 = sphi 0, %s80
      %s95 = sphi 0, %s81
      %s99 = sphi 0, %s99
      %s101 = sphi 0, %s99
      %s102 = sphi 0, %s101
      %s116 = sphi 0, %s102
      %s120 = sphi 0, %s120
      %s122 = sphi 0, %s120
      %s123 = sphi 0, %s122
      %s137 = sphi 0, %s123
      %s141 = sphi 0, %s141
      %s143 = sphi 0, %s141
      %s144 = sphi 0, %s143
      %s158 = sphi 0, %s144
      %s162 = sphi 0, %s162
      %s164 = sphi 0, %s162
      %s165 = sphi 0, %s164
      %s179 = sphi 0, %s165
      %s183 = sphi 0, %s183
      %s185 = sphi 0, %s183
      %s186 = sphi 0, %s185
      %s200 = sphi 0, %s186
      %s204 = sphi 0, %s204
      %s206 = sphi 0, %s204
      %s207 = sphi 0, %s206
      %s221 = sphi 0, %s207
      %s227 = sphi 0, %s229
      %s230 = sphi 0, %s227
      %s231 = sphi 0, %s230
      %s247 = sphi 0, %s231
    $region4: #{tpu_custom_call.1} parent=1 // loop_header_branch
      %21 = sbr.rel (%p19) target = $region8
    $region5: #{tpu_custom_call.1} parent=1 // loop_body
      %s23 = ssub.s32 %s18, 1
      %s24 = ssub.s32 %s18, 2
      %s25 = sadd.s32 %s18, 1
      %s26 = ssub.s32 %s18, %s25
      %p27 = scmp.eq.s32.totalorder %s26, 0
      %s29 = sadd.s32 %s28, 1
      %s30 = scalar_select %p27, %s28, %s29
      %p33 = pneg %p27
      %p34 = scmp.eq.s32.totalorder %s18, 1
      %p35 = por %p33, %p34
      %p36 = scmp.ne.s32.totalorder %s28, %s31
      %p37 = scmp.eq.s32.totalorder %s18, 0
      %p38 = por %p36, %p37
      %p39 = scmp.ne.s32.totalorder %s28, %s31
      %p40 = scmp.eq.s32.totalorder %s23, 1
      %p41 = por %p39, %p40
      %p42 = scmp.ne.s32.totalorder %s31, %s32
      %p43 = scmp.eq.s32.totalorder %s23, 0
      %p44 = por %p42, %p43
      %p45 = scmp.ne.s32.totalorder %s31, %s32
      %p46 = scmp.eq.s32.totalorder %s24, 1
      %p47 = por %p45, %p46
      %p49 = scmp.ne.s32.totalorder %s32, %s48
      %p50 = scmp.eq.s32.totalorder %s24, 0
      %p51 = por %p49, %p50
      %s52 = ssub.s32 %s18, %s25
      %p53 = scmp.eq.s32.totalorder %s52, 0
      %s55 = sadd.s32 %s54, 1
      %s56 = scalar_select %p53, %s54, %s55
      %p59 = pneg %p53
      %p60 = scmp.eq.s32.totalorder %s18, 1
      %p61 = por %p59, %p60
      %p62 = scmp.ne.s32.totalorder %s54, %s57
      %p63 = scmp.eq.s32.totalorder %s18, 0
      %p64 = por %p62, %p63
      %p65 = scmp.ne.s32.totalorder %s54, %s57
      %p66 = scmp.eq.s32.totalorder %s23, 1
      %p67 = por %p65, %p66
      %p68 = scmp.ne.s32.totalorder %s57, %s58
      %p69 = scmp.eq.s32.totalorder %s23, 0
      %p70 = por %p68, %p69
      %p71 = scmp.ne.s32.totalorder %s57, %s58
      %p72 = scmp.eq.s32.totalorder %s24, 1
      %p73 = por %p71, %p72
      %p75 = scmp.ne.s32.totalorder %s58, %s74
      %p76 = scmp.eq.s32.totalorder %s24, 0
      %p77 = por %p75, %p76
      %s79 = sadd.s32 %s78, 1
      %p82 = scmp.eq.s32.totalorder %s18, 1
      %p83 = scmp.ne.s32.totalorder %s78, %s80
      %p84 = scmp.eq.s32.totalorder %s18, 0
      %p85 = por %p83, %p84
      %p86 = scmp.ne.s32.totalorder %s78, %s80
      %p87 = scmp.eq.s32.totalorder %s23, 1
      %p88 = por %p86, %p87
      %p89 = scmp.ne.s32.totalorder %s80, %s81
      %p90 = scmp.eq.s32.totalorder %s23, 0
      %p91 = por %p89, %p90
      %p92 = scmp.ne.s32.totalorder %s80, %s81
      %p93 = scmp.eq.s32.totalorder %s24, 1
      %p94 = por %p92, %p93
      %p96 = scmp.ne.s32.totalorder %s81, %s95
      %p97 = scmp.eq.s32.totalorder %s24, 0
      %p98 = por %p96, %p97
      %s100 = sadd.s32 %s99, 1
      %p103 = scmp.eq.s32.totalorder %s18, 1
      %p104 = scmp.ne.s32.totalorder %s99, %s101
      %p105 = scmp.eq.s32.totalorder %s18, 0
      %p106 = por %p104, %p105
      %p107 = scmp.ne.s32.totalorder %s99, %s101
      %p108 = scmp.eq.s32.totalorder %s23, 1
      %p109 = por %p107, %p108
      %p110 = scmp.ne.s32.totalorder %s101, %s102
      %p111 = scmp.eq.s32.totalorder %s23, 0
      %p112 = por %p110, %p111
      %p113 = scmp.ne.s32.totalorder %s101, %s102
      %p114 = scmp.eq.s32.totalorder %s24, 1
      %p115 = por %p113, %p114
      %p117 = scmp.ne.s32.totalorder %s102, %s116
      %p118 = scmp.eq.s32.totalorder %s24, 0
      %p119 = por %p117, %p118
      %s121 = sadd.s32 %s120, 1
      %p124 = scmp.eq.s32.totalorder %s18, 1
      %p125 = scmp.ne.s32.totalorder %s120, %s122
      %p126 = scmp.eq.s32.totalorder %s18, 0
      %p127 = por %p125, %p126
      %p128 = scmp.ne.s32.totalorder %s120, %s122
      %p129 = scmp.eq.s32.totalorder %s23, 1
      %p130 = por %p128, %p129
      %p131 = scmp.ne.s32.totalorder %s122, %s123
      %p132 = scmp.eq.s32.totalorder %s23, 0
      %p133 = por %p131, %p132
      %p134 = scmp.ne.s32.totalorder %s122, %s123
      %p135 = scmp.eq.s32.totalorder %s24, 1
      %p136 = por %p134, %p135
      %p138 = scmp.ne.s32.totalorder %s123, %s137
      %p139 = scmp.eq.s32.totalorder %s24, 0
      %p140 = por %p138, %p139
      %s142 = sadd.s32 %s141, 1
      %p145 = scmp.eq.s32.totalorder %s18, 1
      %p146 = scmp.ne.s32.totalorder %s141, %s143
      %p147 = scmp.eq.s32.totalorder %s18, 0
      %p148 = por %p146, %p147
      %p149 = scmp.ne.s32.totalorder %s141, %s143
      %p150 = scmp.eq.s32.totalorder %s23, 1
      %p151 = por %p149, %p150
      %p152 = scmp.ne.s32.totalorder %s143, %s144
      %p153 = scmp.eq.s32.totalorder %s23, 0
      %p154 = por %p152, %p153
      %p155 = scmp.ne.s32.totalorder %s143, %s144
      %p156 = scmp.eq.s32.totalorder %s24, 1
      %p157 = por %p155, %p156
      %p159 = scmp.ne.s32.totalorder %s144, %s158
      %p160 = scmp.eq.s32.totalorder %s24, 0
      %p161 = por %p159, %p160
      %s163 = sadd.s32 %s162, 1
      %p166 = scmp.eq.s32.totalorder %s18, 1
      %p167 = scmp.ne.s32.totalorder %s162, %s164
      %p168 = scmp.eq.s32.totalorder %s18, 0
      %p169 = por %p167, %p168
      %p170 = scmp.ne.s32.totalorder %s162, %s164
      %p171 = scmp.eq.s32.totalorder %s23, 1
      %p172 = por %p170, %p171
      %p173 = scmp.ne.s32.totalorder %s164, %s165
      %p174 = scmp.eq.s32.totalorder %s23, 0
      %p175 = por %p173, %p174
      %p176 = scmp.ne.s32.totalorder %s164, %s165
      %p177 = scmp.eq.s32.totalorder %s24, 1
      %p178 = por %p176, %p177
      %p180 = scmp.ne.s32.totalorder %s165, %s179
      %p181 = scmp.eq.s32.totalorder %s24, 0
      %p182 = por %p180, %p181
      %s184 = sadd.s32 %s183, 1
      %p187 = scmp.eq.s32.totalorder %s18, 1
      %p188 = scmp.ne.s32.totalorder %s183, %s185
      %p189 = scmp.eq.s32.totalorder %s18, 0
      %p190 = por %p188, %p189
      %p191 = scmp.ne.s32.totalorder %s183, %s185
      %p192 = scmp.eq.s32.totalorder %s23, 1
      %p193 = por %p191, %p192
      %p194 = scmp.ne.s32.totalorder %s185, %s186
      %p195 = scmp.eq.s32.totalorder %s23, 0
      %p196 = por %p194, %p195
      %p197 = scmp.ne.s32.totalorder %s185, %s186
      %p198 = scmp.eq.s32.totalorder %s24, 1
      %p199 = por %p197, %p198
      %p201 = scmp.ne.s32.totalorder %s186, %s200
      %p202 = scmp.eq.s32.totalorder %s24, 0
      %p203 = por %p201, %p202
      %s205 = sadd.s32 %s204, 1
      %p208 = scmp.eq.s32.totalorder %s18, 1
      %p209 = scmp.ne.s32.totalorder %s204, %s206
      %p210 = scmp.eq.s32.totalorder %s18, 0
      %p211 = por %p209, %p210
      %p212 = scmp.ne.s32.totalorder %s204, %s206
      %p213 = scmp.eq.s32.totalorder %s23, 1
      %p214 = por %p212, %p213
      %p215 = scmp.ne.s32.totalorder %s206, %s207
      %p216 = scmp.eq.s32.totalorder %s23, 0
      %p217 = por %p215, %p216
      %p218 = scmp.ne.s32.totalorder %s206, %s207
      %p219 = scmp.eq.s32.totalorder %s24, 1
      %p220 = por %p218, %p219
      %p222 = scmp.ne.s32.totalorder %s207, %s221
      %p223 = scmp.eq.s32.totalorder %s24, 0
      %p224 = por %p222, %p223
      %s225 = ssub.s32 %s18, %s25
      %p226 = scmp.eq.s32.totalorder %s225, 0
      %s228 = sadd.s32 %s227, 1
      %s229 = scalar_select %p226, %s227, %s228
      %p232 = pneg %p226
      %p233 = scmp.eq.s32.totalorder %s18, 1
      %p234 = por %p232, %p233
      %p235 = scmp.ne.s32.totalorder %s227, %s230
      %p236 = scmp.eq.s32.totalorder %s18, 0
      %p237 = por %p235, %p236
      %p238 = scmp.ne.s32.totalorder %s227, %s230
      %p239 = scmp.eq.s32.totalorder %s23, 1
      %p240 = por %p238, %p239
      %p241 = scmp.ne.s32.totalorder %s230, %s231
      %p242 = scmp.eq.s32.totalorder %s23, 0
      %p243 = por %p241, %p242
      %p244 = scmp.ne.s32.totalorder %s230, %s231
      %p245 = scmp.eq.s32.totalorder %s24, 1
      %p246 = por %p244, %p245
      %p248 = scmp.ne.s32.totalorder %s231, %s247
      %p249 = scmp.eq.s32.totalorder %s24, 0
      %p250 = por %p248, %p249
      %p251 = scmp.le.s32.totalorder 1, %s18
      %p252 = scmp.lt.s32.totalorder %s18, 3
      %p253 = pnand %p251, %p252
      %p254 = pneg %p253
      // Predicated region
      $region9: #{tpu_custom_call.1} parent=5 // pred_check
        _
      $region10: #{tpu_custom_call.1} parent=5 // pred_check_branch
        %256 = sbr.rel (%p253) target = $region12
      $region11: #{tpu_custom_call.1} parent=5 // pred_region
        %s257 = ssub.s32 %s18, 1
        // Predicated region
        $region13: #{tpu_custom_call.1} parent=11 // pred_check
          %p258 = pneg %p91
        $region14: #{tpu_custom_call.1} parent=11 // pred_check_branch
          %260 = sbr.rel (%p258) target = $region16
        $region15: #{tpu_custom_call.1} parent=11 // pred_region
          _
        $region16: #{tpu_custom_call.1} parent=11 // pred_fallthru
          _
        // Predicated region
        $region17: #{tpu_custom_call.1} parent=11 // pred_check
          %p261 = pneg %p112
        $region18: #{tpu_custom_call.1} parent=11 // pred_check_branch
          %263 = sbr.rel (%p261) target = $region20
        $region19: #{tpu_custom_call.1} parent=11 // pred_region
          _
        $region20: #{tpu_custom_call.1} parent=11 // pred_fallthru
          _
        // Predicated region
        $region21: #{tpu_custom_call.1} parent=11 // pred_check
          %p264 = pneg %p133
        $region22: #{tpu_custom_call.1} parent=11 // pred_check_branch
          %266 = sbr.rel (%p264) target = $region24
        $region23: #{tpu_custom_call.1} parent=11 // pred_region
          _
        $region24: #{tpu_custom_call.1} parent=11 // pred_fallthru
          _
        // Predicated region
        $region25: #{tpu_custom_call.1} parent=11 // pred_check
          %p267 = pneg %p154
        $region26: #{tpu_custom_call.1} parent=11 // pred_check_branch
          %269 = sbr.rel (%p267) target = $region28
        $region27: #{tpu_custom_call.1} parent=11 // pred_region
          _
        $region28: #{tpu_custom_call.1} parent=11 // pred_fallthru
          _
        // Predicated region
        $region29: #{tpu_custom_call.1} parent=11 // pred_check
          %p270 = pneg %p175
        $region30: #{tpu_custom_call.1} parent=11 // pred_check_branch
          %272 = sbr.rel (%p270) target = $region32
        $region31: #{tpu_custom_call.1} parent=11 // pred_region
          _
        $region32: #{tpu_custom_call.1} parent=11 // pred_fallthru
          _
        // Predicated region
        $region33: #{tpu_custom_call.1} parent=11 // pred_check
          %p273 = pneg %p196
        $region34: #{tpu_custom_call.1} parent=11 // pred_check_branch
          %275 = sbr.rel (%p273) target = $region36
        $region35: #{tpu_custom_call.1} parent=11 // pred_region
          _
        $region36: #{tpu_custom_call.1} parent=11 // pred_fallthru
          _
        // Predicated region
        $region37: #{tpu_custom_call.1} parent=11 // pred_check
          %p276 = pneg %p217
        $region38: #{tpu_custom_call.1} parent=11 // pred_check_branch
          %278 = sbr.rel (%p276) target = $region40
        $region39: #{tpu_custom_call.1} parent=11 // pred_region
          _
        $region40: #{tpu_custom_call.1} parent=11 // pred_fallthru
          _
      $region12: #{tpu_custom_call.1} parent=5 // pred_fallthru
        _
      %p279 = scmp.lt.s32.totalorder %s18, 2
      // Predicated region
      $region41: #{tpu_custom_call.1} parent=5 // pred_check
        %p280 = pneg %p279
      $region42: #{tpu_custom_call.1} parent=5 // pred_check_branch
        %282 = sbr.rel (%p280) target = $region44
      $region43: #{tpu_custom_call.1} parent=5 // pred_region
        // Predicated region
        $region45: #{tpu_custom_call.1} parent=43 // pred_check
          %p283 = pneg %p38
        $region46: #{tpu_custom_call.1} parent=43 // pred_check_branch
          %285 = sbr.rel (%p283) target = $region48
        $region47: #{tpu_custom_call.1} parent=43 // pred_region
          %s286 = smul.u32 16, %s18
          %p287 = scmp.lt.s32.totalorder %s286, 31
          %s288 = scalar_select %p287, %s286, 31
          %s289 = smul.addr %s288, 8
          %s290 = scalar_lea.vmem %s0, %s289
          %s291 = smul.u32 16, %s18
        $region48: #{tpu_custom_call.1} parent=43 // pred_fallthru
          _
        // Predicated region
        $region49: #{tpu_custom_call.1} parent=43 // pred_check
          %p292 = pneg %p64
        $region50: #{tpu_custom_call.1} parent=43 // pred_check_branch
          %294 = sbr.rel (%p292) target = $region52
        $region51: #{tpu_custom_call.1} parent=43 // pred_region
          %s295 = smul.u32 2, %s18
          %p296 = scmp.lt.s32.totalorder %s295, 3
          %s297 = scalar_select %p296, %s295, 3
          %s298 = smul.addr %s297, 4
          %s299 = scalar_lea.vmem %s1, %s298
          %s300 = smul.u32 2, %s18
        $region52: #{tpu_custom_call.1} parent=43 // pred_fallthru
          _
      $region44: #{tpu_custom_call.1} parent=5 // pred_fallthru
        _
      %p301 = scmp.le.s32.totalorder 1, %s18
      %p302 = scmp.lt.s32.totalorder %s18, 3
      %p303 = pnand %p301, %p302
      %p304 = pneg %p303
      // Predicated region
      $region53: #{tpu_custom_call.1} parent=5 // pred_check
        _
      $region54: #{tpu_custom_call.1} parent=5 // pred_check_branch
        %306 = sbr.rel (%p303) target = $region56
      $region55: #{tpu_custom_call.1} parent=5 // pred_region
        %s307 = ssub.s32 %s18, 1
        %s308 = smul.u32 16, %s23
        %p309 = scmp.lt.s32.totalorder %s308, 31
        %s310 = scalar_select %p309, %s308, 31
        %s311 = smul.addr %s310, 8
        %s312 = scalar_lea.vmem %s0, %s311
        %p313 = pneg %p44
        %p314 = pneg %p41
        %s315 = smul.u32 2, %s23
        %p316 = scmp.lt.s32.totalorder %s315, 3
        %s317 = scalar_select %p316, %s315, 3
        %s318 = smul.addr %s317, 4
        %s319 = scalar_lea.vmem %s1, %s318
        %p320 = pneg %p70
        %p321 = pneg %p67
        %p322 = pneg %p91
        %p323 = pneg %p88
        %p324 = pneg %p112
        %p325 = pneg %p109
        %p326 = pneg %p133
        %p327 = pneg %p130
        %p328 = pneg %p154
        %p329 = pneg %p151
        %p330 = pneg %p175
        %p331 = pneg %p172
        %p332 = pneg %p196
        %p333 = pneg %p193
        %p334 = pneg %p217
        %p335 = pneg %p214
        %p336 = pneg %p243
        %p337 = pneg %p240
        %s338 = sand.u32 %s230, 1
        %s339 = scalar_lea.sflag [#allocation3], %s338
        %s340 = sand.u32 %s230, 1
        %s341 = smul.addr %s340, 16
        %s342 = scalar_lea.vmem [#allocation2], %s341
        %s343 = smul.u32 16, %s23
        %p344 = scmp.lt.s32.totalorder %s343, 31
        %s345 = scalar_select %p344, %s343, 31
        %s346 = smul.addr %s345, 8
        %s347 = scalar_lea.vmem %s0, %s346
        %s348 = smul.u32 16, %s23
        %s349 = smul.u32 2, %s23
        %p350 = scmp.lt.s32.totalorder %s349, 3
        %s351 = scalar_select %p350, %s349, 3
        %s352 = smul.addr %s351, 4
        %s353 = scalar_lea.vmem %s1, %s352
        %s354 = smul.u32 2, %s23
        %s355 = smul.u32 16, %s23
        %v357 = vld [vmem:[%s347] sm:$0xff]
        %v358 = vld [vmem:[%s347 + $0x8] sm:$0xff]
        %v359 = vld [vmem:[%s347 + $0x10] sm:$0xff]
        %v360 = vld [vmem:[%s347 + $0x18] sm:$0xff]
        %v361 = vld [vmem:[%s347 + $0x20] sm:$0xff]
        %v362 = vld [vmem:[%s347 + $0x28] sm:$0xff]
        %v363 = vld [vmem:[%s347 + $0x30] sm:$0xff]
        %v364 = vld [vmem:[%s347 + $0x38] sm:$0xff]
        %v365 = vld [vmem:[%s347 + $0x40] sm:$0xff]
        %v366 = vld [vmem:[%s347 + $0x48] sm:$0xff]
        %v367 = vld [vmem:[%s347 + $0x50] sm:$0xff]
        %v368 = vld [vmem:[%s347 + $0x58] sm:$0xff]
        %v369 = vld [vmem:[%s347 + $0x60] sm:$0xff]
        %v370 = vld [vmem:[%s347 + $0x68] sm:$0xff]
        %v371 = vld [vmem:[%s347 + $0x70] sm:$0xff]
        %v372 = vld [vmem:[%s347 + $0x78] sm:$0xff]
        %v373 = vpack.c.bf16 %v358, %v357
        %v374 = vpack.c.bf16 %v360, %v359
        %v375 = vpack.c.bf16 %v362, %v361
        %v376 = vpack.c.bf16 %v364, %v363
        %v377 = vpack.c.bf16 %v366, %v365
        %v378 = vpack.c.bf16 %v368, %v367
        %v379 = vpack.c.bf16 %v370, %v369
        %v380 = vpack.c.bf16 %v372, %v371
        %v381 = vld [vmem:[%s2] sm:$0xff]
        %v382 = vld [vmem:[%s2 + $0x8] sm:$0xff]
        %v383 = vld [vmem:[%s4] sm:$0x3]
        %v385 = vperm.slane %v383, 0
        %v386 = vperm.slane %v383, 1
        %v391 = vunpack.c.l.b16 %v381
        %v392 = vunpack.c.h.b16 %v381
        %v393 = vunpack.c.l.b16 %v382
        %v394 = vunpack.c.h.b16 %v382
        %v395 = vpack.c.b16 %v393, %v391
        %v396 = vpack.c.b16 %v394, %v392
        %vm399 = vcmask 130048
        %v401 = vsel %vm399, %v373, 0
        %v404 = vsel %vm399, %v374, 0
        %v407 = vsel %vm399, %v375, 0
        %v410 = vsel %vm399, %v376, 0
        %v413 = vsel %vm399, %v377, 0
        %v416 = vsel %vm399, %v378, 0
        %v419 = vsel %vm399, %v379, 0
        %v422 = vsel %vm399, %v380, 0
        %424 = vmatpush.bf16.msra.mxu0 0
        %425 = vmatpush.bf16.msra.mxu0 0
        %426 = vmatpush.bf16.msra.mxu0 0
        %427 = vmatpush.bf16.msra.mxu0 0
        %428 = vmatpush.bf16.msra.mxu0 0
        %429 = vmatpush.bf16.msra.mxu0 0
        %430 = vmatpush.bf16.msra.mxu0 0
        %431 = vmatpush.bf16.msra.mxu0 %v395
        %432 = vmatmul.bf16.gmra.mxu0 %v401
        %v433 = vpop.f32.mrf.mxu0
        %v434 = vadd.f32 %v385, %v433
        %v435 = vpop.f32.mrf.mxu0
        %v436 = vadd.f32 %v385, %v435
        %437 = vmatmul.bf16.gmra.mxu0 %v404
        %v438 = vpop.f32.mrf.mxu0
        %v439 = vadd.f32 %v385, %v438
        %v440 = vpop.f32.mrf.mxu0
        %v441 = vadd.f32 %v385, %v440
        %442 = vmatmul.bf16.gmra.mxu0 %v407
        %v443 = vpop.f32.mrf.mxu0
        %v444 = vadd.f32 %v385, %v443
        %v445 = vpop.f32.mrf.mxu0
        %v446 = vadd.f32 %v385, %v445
        %447 = vmatmul.bf16.gmra.mxu0 %v410
        %v448 = vpop.f32.mrf.mxu0
        %v449 = vadd.f32 %v385, %v448
        %v450 = vpop.f32.mrf.mxu0
        %v451 = vadd.f32 %v385, %v450
        %452 = vmatmul.bf16.gmra.mxu0 %v413
        %v453 = vpop.f32.mrf.mxu0
        %v454 = vadd.f32 %v385, %v453
        %v455 = vpop.f32.mrf.mxu0
        %v456 = vadd.f32 %v385, %v455
        %457 = vmatmul.bf16.gmra.mxu0 %v416
        %v458 = vpop.f32.mrf.mxu0
        %v459 = vadd.f32 %v385, %v458
        %v460 = vpop.f32.mrf.mxu0
        %v461 = vadd.f32 %v385, %v460
        %462 = vmatmul.bf16.gmra.mxu0 %v419
        %v463 = vpop.f32.mrf.mxu0
        %v464 = vadd.f32 %v385, %v463
        %v465 = vpop.f32.mrf.mxu0
        %v466 = vadd.f32 %v385, %v465
        %467 = vmatmul.bf16.gmra.mxu0 %v422
        %v468 = vpop.f32.mrf.mxu0
        %v469 = vadd.f32 %v385, %v468
        %v470 = vpop.f32.mrf.mxu0
        %v471 = vadd.f32 %v385, %v470
        %472 = vdwg.mxu0
        %473 = vmatpush.bf16.msra.mxu0 0
        %474 = vmatpush.bf16.msra.mxu0 0
        %475 = vmatpush.bf16.msra.mxu0 0
        %476 = vmatpush.bf16.msra.mxu0 0
        %477 = vmatpush.bf16.msra.mxu0 0
        %478 = vmatpush.bf16.msra.mxu0 0
        %479 = vmatpush.bf16.msra.mxu0 0
        %480 = vmatpush.bf16.msra.mxu0 %v396
        %481 = vmatmul.bf16.gmra.mxu0 %v401
        %v482 = vpop.f32.mrf.mxu0
        %v483 = vadd.f32 %v386, %v482
        %v484 = vpop.f32.mrf.mxu0
        %v485 = vadd.f32 %v386, %v484
        %486 = vmatmul.bf16.gmra.mxu0 %v404
        %v487 = vpop.f32.mrf.mxu0
        %v488 = vadd.f32 %v386, %v487
        %v489 = vpop.f32.mrf.mxu0
        %v490 = vadd.f32 %v386, %v489
        %491 = vmatmul.bf16.gmra.mxu0 %v407
        %v492 = vpop.f32.mrf.mxu0
        %v493 = vadd.f32 %v386, %v492
        %v494 = vpop.f32.mrf.mxu0
        %v495 = vadd.f32 %v386, %v494
        %496 = vmatmul.bf16.gmra.mxu0 %v410
        %v497 = vpop.f32.mrf.mxu0
        %v498 = vadd.f32 %v386, %v497
        %v499 = vpop.f32.mrf.mxu0
        %v500 = vadd.f32 %v386, %v499
        %501 = vmatmul.bf16.gmra.mxu0 %v413
        %v502 = vpop.f32.mrf.mxu0
        %v503 = vadd.f32 %v386, %v502
        %v504 = vpop.f32.mrf.mxu0
        %v505 = vadd.f32 %v386, %v504
        %506 = vmatmul.bf16.gmra.mxu0 %v416
        %v507 = vpop.f32.mrf.mxu0
        %v508 = vadd.f32 %v386, %v507
        %v509 = vpop.f32.mrf.mxu0
        %v510 = vadd.f32 %v386, %v509
        %511 = vmatmul.bf16.gmra.mxu0 %v419
        %v512 = vpop.f32.mrf.mxu0
        %v513 = vadd.f32 %v386, %v512
        %v514 = vpop.f32.mrf.mxu0
        %v515 = vadd.f32 %v386, %v514
        %516 = vmatmul.bf16.gmra.mxu0 %v422
        %v517 = vpop.f32.mrf.mxu0
        %v518 = vadd.f32 %v386, %v517
        %v519 = vpop.f32.mrf.mxu0
        %v520 = vadd.f32 %v386, %v519
        %521 = vdwg.mxu0
        %v522 = vld [vmem:[%s353] sm:$0xf]
        %v523 = vld [vmem:[%s353 + $0x4] sm:$0xf]
        %v524 = vld [vmem:[%s3] sm:$0xff]
        %v525 = vld [vmem:[%s3 + $0x8] sm:$0xff]
        %v526 = vld [vmem:[%s3 + $0x10] sm:$0xff]
        %v527 = vld [vmem:[%s3 + $0x18] sm:$0xff]
        %v528 = vld [vmem:[%s3 + $0x20] sm:$0xff]
        %v529 = vld [vmem:[%s3 + $0x28] sm:$0xff]
        %v530 = vld [vmem:[%s3 + $0x30] sm:$0xff]
        %v531 = vld [vmem:[%s3 + $0x38] sm:$0xff]
        %v532 = vld [vmem:[%s3 + $0x40] sm:$0xff]
        %v533 = vld [vmem:[%s3 + $0x48] sm:$0xff]
        %v534 = vld [vmem:[%s3 + $0x50] sm:$0xff]
        %v535 = vld [vmem:[%s3 + $0x58] sm:$0xff]
        %v536 = vld [vmem:[%s3 + $0x60] sm:$0xff]
        %v537 = vld [vmem:[%s3 + $0x68] sm:$0xff]
        %v538 = vld [vmem:[%s3 + $0x70] sm:$0xff]
        %v539 = vld [vmem:[%s3 + $0x78] sm:$0xff]
        %v542 = vunpack.c.l.b16 %v522
        %v543 = vunpack.c.l.b16 %v523
        %v544 = vpack.c.b16 %v543, %v542
        %v562 = vunpack.c.l.b16 %v524
        %v563 = vunpack.c.h.b16 %v524
        %v564 = vunpack.c.l.b16 %v525
        %v565 = vunpack.c.h.b16 %v525
        %v566 = vunpack.c.l.b16 %v526
        %v567 = vunpack.c.h.b16 %v526
        %v568 = vunpack.c.l.b16 %v527
        %v569 = vunpack.c.h.b16 %v527
        %v570 = vunpack.c.l.b16 %v528
        %v571 = vunpack.c.h.b16 %v528
        %v572 = vunpack.c.l.b16 %v529
        %v573 = vunpack.c.h.b16 %v529
        %v574 = vunpack.c.l.b16 %v530
        %v575 = vunpack.c.h.b16 %v530
        %v576 = vunpack.c.l.b16 %v531
        %v577 = vunpack.c.h.b16 %v531
        %v578 = vunpack.c.l.b16 %v532
        %v579 = vunpack.c.h.b16 %v532
        %v580 = vunpack.c.l.b16 %v533
        %v581 = vunpack.c.h.b16 %v533
        %v582 = vunpack.c.l.b16 %v534
        %v583 = vunpack.c.h.b16 %v534
        %v584 = vunpack.c.l.b16 %v535
        %v585 = vunpack.c.h.b16 %v535
        %v586 = vunpack.c.l.b16 %v536
        %v587 = vunpack.c.h.b16 %v536
        %v588 = vunpack.c.l.b16 %v537
        %v589 = vunpack.c.h.b16 %v537
        %v590 = vunpack.c.l.b16 %v538
        %v591 = vunpack.c.h.b16 %v538
        %v592 = vunpack.c.l.b16 %v539
        %v593 = vunpack.c.h.b16 %v539
        %v594 = vpack.c.b16 %v564, %v562
        %v595 = vpack.c.b16 %v565, %v563
        %v596 = vpack.c.b16 %v568, %v566
        %v597 = vpack.c.b16 %v569, %v567
        %v598 = vpack.c.b16 %v572, %v570
        %v599 = vpack.c.b16 %v573, %v571
        %v600 = vpack.c.b16 %v576, %v574
        %v601 = vpack.c.b16 %v577, %v575
        %v602 = vpack.c.b16 %v580, %v578
        %v603 = vpack.c.b16 %v581, %v579
        %v604 = vpack.c.b16 %v584, %v582
        %v605 = vpack.c.b16 %v585, %v583
        %v606 = vpack.c.b16 %v588, %v586
        %v607 = vpack.c.b16 %v589, %v587
        %v608 = vpack.c.b16 %v592, %v590
        %v609 = vpack.c.b16 %v593, %v591
        %626 = vmatpush.bf16.msra.mxu0 %v608
        %627 = vmatpush.bf16.msra.mxu0 %v606
        %628 = vmatpush.bf16.msra.mxu0 %v604
        %629 = vmatpush.bf16.msra.mxu0 %v602
        %630 = vmatpush.bf16.msra.mxu0 %v600
        %631 = vmatpush.bf16.msra.mxu0 %v598
        %632 = vmatpush.bf16.msra.mxu0 %v596
        %633 = vmatpush.bf16.msra.mxu0 %v594
        %634 = vmatmul.bf16.gmra.mxu0 %v544
        %v635 = vpop.f32.mrf.mxu0
        %v636 = vadd.f32 0.0, %v635
        %v637 = vpop.f32.mrf.mxu0
        %v638 = vadd.f32 0.0, %v637
        %639 = vdwg.mxu0
        %640 = vmatpush.bf16.msra.mxu0 %v609
        %641 = vmatpush.bf16.msra.mxu0 %v607
        %642 = vmatpush.bf16.msra.mxu0 %v605
        %643 = vmatpush.bf16.msra.mxu0 %v603
        %644 = vmatpush.bf16.msra.mxu0 %v601
        %645 = vmatpush.bf16.msra.mxu0 %v599
        %646 = vmatpush.bf16.msra.mxu0 %v597
        %647 = vmatpush.bf16.msra.mxu0 %v595
        %648 = vmatmul.bf16.gmra.mxu0 %v544
        %v649 = vpop.f32.mrf.mxu0
        %v650 = vadd.f32 0.0, %v649
        %v651 = vpop.f32.mrf.mxu0
        %v652 = vadd.f32 0.0, %v651
        %653 = vdwg.mxu0
        %v658 = vrot.slane %v650, 7
        %v659 = vrot.slane %v652, 7
        %vm660 = vcmask 1040384
        %v661 = vsel %vm660, %v636, %v658
        %vm662 = vcmask 1041409
        %v663 = vsel %vm662, %v636, %v658
        %v664 = vrot.slane %v663, 1
        %vm665 = vcmask 1042434
        %v666 = vsel %vm665, %v636, %v658
        %v667 = vrot.slane %v666, 2
        %vm668 = vcmask 1043459
        %v669 = vsel %vm668, %v636, %v658
        %v670 = vrot.slane %v669, 3
        %vm671 = vcmask 1044484
        %v672 = vsel %vm671, %v636, %v658
        %v673 = vrot.slane %v672, 4
        %vm674 = vcmask 1045509
        %v675 = vsel %vm674, %v636, %v658
        %v676 = vrot.slane %v675, 5
        %vm677 = vcmask 1046534
        %v678 = vsel %vm677, %v636, %v658
        %v679 = vrot.slane %v678, 6
        %vm680 = vcmask 1046528
        %v681 = vsel %vm680, %v658, %v636
        %v682 = vrot.slane %v681, 7
        %v683 = vsel %vm660, %v638, %v659
        %v684 = vsel %vm662, %v638, %v659
        %v685 = vrot.slane %v684, 1
        %v686 = vsel %vm665, %v638, %v659
        %v687 = vrot.slane %v686, 2
        %v688 = vsel %vm668, %v638, %v659
        %v689 = vrot.slane %v688, 3
        %v690 = vsel %vm671, %v638, %v659
        %v691 = vrot.slane %v690, 4
        %v692 = vsel %vm674, %v638, %v659
        %v693 = vrot.slane %v692, 5
        %v694 = vsel %vm677, %v638, %v659
        %v695 = vrot.slane %v694, 6
        %v696 = vsel %vm680, %v659, %v638
        %v697 = vrot.slane %v696, 7
        %v698 = vperm.slane %v661, 0
        %v699 = vperm.slane %v661, 1
        %v700 = vperm.slane %v664, 0
        %v701 = vperm.slane %v664, 1
        %v702 = vperm.slane %v667, 0
        %v703 = vperm.slane %v667, 1
        %v704 = vperm.slane %v670, 0
        %v705 = vperm.slane %v670, 1
        %v706 = vperm.slane %v673, 0
        %v707 = vperm.slane %v673, 1
        %v708 = vperm.slane %v676, 0
        %v709 = vperm.slane %v676, 1
        %v710 = vperm.slane %v679, 0
        %v711 = vperm.slane %v679, 1
        %v712 = vperm.slane %v682, 0
        %v713 = vperm.slane %v682, 1
        %v714 = vperm.slane %v683, 0
        %v715 = vperm.slane %v683, 1
        %v716 = vperm.slane %v685, 0
        %v717 = vperm.slane %v685, 1
        %v718 = vperm.slane %v687, 0
        %v719 = vperm.slane %v687, 1
        %v720 = vperm.slane %v689, 0
        %v721 = vperm.slane %v689, 1
        %v722 = vperm.slane %v691, 0
        %v723 = vperm.slane %v691, 1
        %v724 = vperm.slane %v693, 0
        %v725 = vperm.slane %v693, 1
        %v726 = vperm.slane %v695, 0
        %v727 = vperm.slane %v695, 1
        %v728 = vperm.slane %v697, 0
        %v729 = vperm.slane %v697, 1
        %v762 = vadd.f32 %v434, %v698
        %v763 = vadd.f32 %v483, %v699
        %v764 = vadd.f32 %v436, %v700
        %v765 = vadd.f32 %v485, %v701
        %v766 = vadd.f32 %v439, %v702
        %v767 = vadd.f32 %v488, %v703
        %v768 = vadd.f32 %v441, %v704
        %v769 = vadd.f32 %v490, %v705
        %v770 = vadd.f32 %v444, %v706
        %v771 = vadd.f32 %v493, %v707
        %v772 = vadd.f32 %v446, %v708
        %v773 = vadd.f32 %v495, %v709
        %v774 = vadd.f32 %v449, %v710
        %v775 = vadd.f32 %v498, %v711
        %v776 = vadd.f32 %v451, %v712
        %v777 = vadd.f32 %v500, %v713
        %v778 = vadd.f32 %v454, %v714
        %v779 = vadd.f32 %v503, %v715
        %v780 = vadd.f32 %v456, %v716
        %v781 = vadd.f32 %v505, %v717
        %v782 = vadd.f32 %v459, %v718
        %v783 = vadd.f32 %v508, %v719
        %v784 = vadd.f32 %v461, %v720
        %v785 = vadd.f32 %v510, %v721
        %v786 = vadd.f32 %v464, %v722
        %v787 = vadd.f32 %v513, %v723
        %v788 = vadd.f32 %v466, %v724
        %v789 = vadd.f32 %v515, %v725
        %v790 = vadd.f32 %v469, %v726
        %v791 = vadd.f32 %v518, %v727
        %v792 = vadd.f32 %v471, %v728
        %v793 = vadd.f32 %v520, %v729
        %vm794 = vcmp.gt.f32.partialorder %v762, 0.0
        %vm795 = vcmp.gt.f32.partialorder %v763, 0.0
        %vm796 = vcmp.gt.f32.partialorder %v764, 0.0
        %vm797 = vcmp.gt.f32.partialorder %v765, 0.0
        %vm798 = vcmp.gt.f32.partialorder %v766, 0.0
        %vm799 = vcmp.gt.f32.partialorder %v767, 0.0
        %vm800 = vcmp.gt.f32.partialorder %v768, 0.0
        %vm801 = vcmp.gt.f32.partialorder %v769, 0.0
        %vm802 = vcmp.gt.f32.partialorder %v770, 0.0
        %vm803 = vcmp.gt.f32.partialorder %v771, 0.0
        %vm804 = vcmp.gt.f32.partialorder %v772, 0.0
        %vm805 = vcmp.gt.f32.partialorder %v773, 0.0
        %vm806 = vcmp.gt.f32.partialorder %v774, 0.0
        %vm807 = vcmp.gt.f32.partialorder %v775, 0.0
        %vm808 = vcmp.gt.f32.partialorder %v776, 0.0
        %vm809 = vcmp.gt.f32.partialorder %v777, 0.0
        %vm810 = vcmp.gt.f32.partialorder %v778, 0.0
        %vm811 = vcmp.gt.f32.partialorder %v779, 0.0
        %vm812 = vcmp.gt.f32.partialorder %v780, 0.0
        %vm813 = vcmp.gt.f32.partialorder %v781, 0.0
        %vm814 = vcmp.gt.f32.partialorder %v782, 0.0
        %vm815 = vcmp.gt.f32.partialorder %v783, 0.0
        %vm816 = vcmp.gt.f32.partialorder %v784, 0.0
        %vm817 = vcmp.gt.f32.partialorder %v785, 0.0
        %vm818 = vcmp.gt.f32.partialorder %v786, 0.0
        %vm819 = vcmp.gt.f32.partialorder %v787, 0.0
        %vm820 = vcmp.gt.f32.partialorder %v788, 0.0
        %vm821 = vcmp.gt.f32.partialorder %v789, 0.0
        %vm822 = vcmp.gt.f32.partialorder %v790, 0.0
        %vm823 = vcmp.gt.f32.partialorder %v791, 0.0
        %vm824 = vcmp.gt.f32.partialorder %v792, 0.0
        %vm825 = vcmp.gt.f32.partialorder %v793, 0.0
        %v826 = vmul.f32 %v762, 0.2
        %v827 = vmul.f32 %v763, 0.2
        %v828 = vmul.f32 %v764, 0.2
        %v829 = vmul.f32 %v765, 0.2
        %v830 = vmul.f32 %v766, 0.2
        %v831 = vmul.f32 %v767, 0.2
        %v832 = vmul.f32 %v768, 0.2
        %v833 = vmul.f32 %v769, 0.2
        %v834 = vmul.f32 %v770, 0.2
        %v835 = vmul.f32 %v771, 0.2
        %v836 = vmul.f32 %v772, 0.2
        %v837 = vmul.f32 %v773, 0.2
        %v838 = vmul.f32 %v774, 0.2
        %v839 = vmul.f32 %v775, 0.2
        %v840 = vmul.f32 %v776, 0.2
        %v841 = vmul.f32 %v777, 0.2
        %v842 = vmul.f32 %v778, 0.2
        %v843 = vmul.f32 %v779, 0.2
        %v844 = vmul.f32 %v780, 0.2
        %v845 = vmul.f32 %v781, 0.2
        %v846 = vmul.f32 %v782, 0.2
        %v847 = vmul.f32 %v783, 0.2
        %v848 = vmul.f32 %v784, 0.2
        %v849 = vmul.f32 %v785, 0.2
        %v850 = vmul.f32 %v786, 0.2
        %v851 = vmul.f32 %v787, 0.2
        %v852 = vmul.f32 %v788, 0.2
        %v853 = vmul.f32 %v789, 0.2
        %v854 = vmul.f32 %v790, 0.2
        %v855 = vmul.f32 %v791, 0.2
        %v856 = vmul.f32 %v792, 0.2
        %v857 = vmul.f32 %v793, 0.2
        %v858 = vsel %vm794, %v762, %v826
        %v859 = vsel %vm795, %v763, %v827
        %v860 = vsel %vm796, %v764, %v828
        %v861 = vsel %vm797, %v765, %v829
        %v862 = vsel %vm798, %v766, %v830
        %v863 = vsel %vm799, %v767, %v831
        %v864 = vsel %vm800, %v768, %v832
        %v865 = vsel %vm801, %v769, %v833
        %v866 = vsel %vm802, %v770, %v834
        %v867 = vsel %vm803, %v771, %v835
        %v868 = vsel %vm804, %v772, %v836
        %v869 = vsel %vm805, %v773, %v837
        %v870 = vsel %vm806, %v774, %v838
        %v871 = vsel %vm807, %v775, %v839
        %v872 = vsel %vm808, %v776, %v840
        %v873 = vsel %vm809, %v777, %v841
        %v874 = vsel %vm810, %v778, %v842
        %v875 = vsel %vm811, %v779, %v843
        %v876 = vsel %vm812, %v780, %v844
        %v877 = vsel %vm813, %v781, %v845
        %v878 = vsel %vm814, %v782, %v846
        %v879 = vsel %vm815, %v783, %v847
        %v880 = vsel %vm816, %v784, %v848
        %v881 = vsel %vm817, %v785, %v849
        %v882 = vsel %vm818, %v786, %v850
        %v883 = vsel %vm819, %v787, %v851
        %v884 = vsel %vm820, %v788, %v852
        %v885 = vsel %vm821, %v789, %v853
        %v886 = vsel %vm822, %v790, %v854
        %v887 = vsel %vm823, %v791, %v855
        %v888 = vsel %vm824, %v792, %v856
        %v889 = vsel %vm825, %v793, %v857
        %v890 = vpack.c.bf16 %v860, %v858
        %v891 = vpack.c.bf16 %v861, %v859
        %v892 = vpack.c.bf16 %v864, %v862
        %v893 = vpack.c.bf16 %v865, %v863
        %v894 = vpack.c.bf16 %v868, %v866
        %v895 = vpack.c.bf16 %v869, %v867
        %v896 = vpack.c.bf16 %v872, %v870
        %v897 = vpack.c.bf16 %v873, %v871
        %v898 = vpack.c.bf16 %v876, %v874
        %v899 = vpack.c.bf16 %v877, %v875
        %v900 = vpack.c.bf16 %v880, %v878
        %v901 = vpack.c.bf16 %v881, %v879
        %v902 = vpack.c.bf16 %v884, %v882
        %v903 = vpack.c.bf16 %v885, %v883
        %v904 = vpack.c.bf16 %v888, %v886
        %v905 = vpack.c.bf16 %v889, %v887
        %v906 = vld [vmem:[%s5] sm:$0xf]
        %v907 = vld [vmem:[%s5 + $0x4] sm:$0xf]
        %v908 = vld [vmem:[%s5 + $0x8] sm:$0xf]
        %v909 = vld [vmem:[%s5 + $0xc] sm:$0xf]
        %v910 = vld [vmem:[%s5 + $0x10] sm:$0xf]
        %v911 = vld [vmem:[%s5 + $0x14] sm:$0xf]
        %v912 = vld [vmem:[%s5 + $0x18] sm:$0xf]
        %v913 = vld [vmem:[%s5 + $0x1c] sm:$0xf]
        %v914 = vld [vmem:[%s5 + $0x20] sm:$0xf]
        %v915 = vld [vmem:[%s5 + $0x24] sm:$0xf]
        %v916 = vld [vmem:[%s5 + $0x28] sm:$0xf]
        %v917 = vld [vmem:[%s5 + $0x2c] sm:$0xf]
        %v918 = vld [vmem:[%s5 + $0x30] sm:$0xf]
        %v919 = vld [vmem:[%s5 + $0x34] sm:$0xf]
        %v920 = vld [vmem:[%s5 + $0x38] sm:$0xf]
        %v921 = vld [vmem:[%s5 + $0x3c] sm:$0xf]
        %v922 = vld [vmem:[%s5 + $0x40] sm:$0xf]
        %v923 = vld [vmem:[%s5 + $0x44] sm:$0xf]
        %v924 = vld [vmem:[%s5 + $0x48] sm:$0xf]
        %v925 = vld [vmem:[%s5 + $0x4c] sm:$0xf]
        %v926 = vld [vmem:[%s5 + $0x50] sm:$0xf]
        %v927 = vld [vmem:[%s5 + $0x54] sm:$0xf]
        %v928 = vld [vmem:[%s5 + $0x58] sm:$0xf]
        %v929 = vld [vmem:[%s5 + $0x5c] sm:$0xf]
        %v930 = vld [vmem:[%s5 + $0x60] sm:$0xf]
        %v931 = vld [vmem:[%s5 + $0x64] sm:$0xf]
        %v932 = vld [vmem:[%s5 + $0x68] sm:$0xf]
        %v933 = vld [vmem:[%s5 + $0x6c] sm:$0xf]
        %v934 = vld [vmem:[%s5 + $0x70] sm:$0xf]
        %v935 = vld [vmem:[%s5 + $0x74] sm:$0xf]
        %v936 = vld [vmem:[%s5 + $0x78] sm:$0xf]
        %v937 = vld [vmem:[%s5 + $0x7c] sm:$0xf]
        %v970 = vunpack.c.l.b16 %v906
        %v971 = vunpack.c.l.b16 %v907
        %v972 = vunpack.c.l.b16 %v908
        %v973 = vunpack.c.l.b16 %v909
        %v974 = vunpack.c.l.b16 %v910
        %v975 = vunpack.c.l.b16 %v911
        %v976 = vunpack.c.l.b16 %v912
        %v977 = vunpack.c.l.b16 %v913
        %v978 = vunpack.c.l.b16 %v914
        %v979 = vunpack.c.l.b16 %v915
        %v980 = vunpack.c.l.b16 %v916
        %v981 = vunpack.c.l.b16 %v917
        %v982 = vunpack.c.l.b16 %v918
        %v983 = vunpack.c.l.b16 %v919
        %v984 = vunpack.c.l.b16 %v920
        %v985 = vunpack.c.l.b16 %v921
        %v986 = vunpack.c.l.b16 %v922
        %v987 = vunpack.c.l.b16 %v923
        %v988 = vunpack.c.l.b16 %v924
        %v989 = vunpack.c.l.b16 %v925
        %v990 = vunpack.c.l.b16 %v926
        %v991 = vunpack.c.l.b16 %v927
        %v992 = vunpack.c.l.b16 %v928
        %v993 = vunpack.c.l.b16 %v929
        %v994 = vunpack.c.l.b16 %v930
        %v995 = vunpack.c.l.b16 %v931
        %v996 = vunpack.c.l.b16 %v932
        %v997 = vunpack.c.l.b16 %v933
        %v998 = vunpack.c.l.b16 %v934
        %v999 = vunpack.c.l.b16 %v935
        %v1000 = vunpack.c.l.b16 %v936
        %v1001 = vunpack.c.l.b16 %v937
        %v1002 = vpack.c.b16 %v971, %v970
        %v1003 = vpack.c.b16 %v973, %v972
        %v1004 = vpack.c.b16 %v975, %v974
        %v1005 = vpack.c.b16 %v977, %v976
        %v1006 = vpack.c.b16 %v979, %v978
        %v1007 = vpack.c.b16 %v981, %v980
        %v1008 = vpack.c.b16 %v983, %v982
        %v1009 = vpack.c.b16 %v985, %v984
        %v1010 = vpack.c.b16 %v987, %v986
        %v1011 = vpack.c.b16 %v989, %v988
        %v1012 = vpack.c.b16 %v991, %v990
        %v1013 = vpack.c.b16 %v993, %v992
        %v1014 = vpack.c.b16 %v995, %v994
        %v1015 = vpack.c.b16 %v997, %v996
        %v1016 = vpack.c.b16 %v999, %v998
        %v1017 = vpack.c.b16 %v1001, %v1000
        %1034 = vmatpush.bf16.msra.mxu0 %v1009
        %1035 = vmatpush.bf16.msra.mxu0 %v1008
        %1036 = vmatpush.bf16.msra.mxu0 %v1007
        %1037 = vmatpush.bf16.msra.mxu0 %v1006
        %1038 = vmatpush.bf16.msra.mxu0 %v1005
        %1039 = vmatpush.bf16.msra.mxu0 %v1004
        %1040 = vmatpush.bf16.msra.mxu0 %v1003
        %1041 = vmatpush.bf16.msra.mxu0 %v1002
        %1042 = vmatmul.bf16.gmra.mxu0 %v890
        %v1043 = vpop.f32.mrf.mxu0
        %v1044 = vadd.f32 0.0, %v1043
        %v1045 = vpop.f32.mrf.mxu0
        %v1046 = vadd.f32 0.0, %v1045
        %1047 = vmatmul.bf16.gmra.mxu0 %v892
        %v1048 = vpop.f32.mrf.mxu0
        %v1049 = vadd.f32 0.0, %v1048
        %v1050 = vpop.f32.mrf.mxu0
        %v1051 = vadd.f32 0.0, %v1050
        %1052 = vmatmul.bf16.gmra.mxu0 %v894
        %v1053 = vpop.f32.mrf.mxu0
        %v1054 = vadd.f32 0.0, %v1053
        %v1055 = vpop.f32.mrf.mxu0
        %v1056 = vadd.f32 0.0, %v1055
        %1057 = vmatmul.bf16.gmra.mxu0 %v896
        %v1058 = vpop.f32.mrf.mxu0
        %v1059 = vadd.f32 0.0, %v1058
        %v1060 = vpop.f32.mrf.mxu0
        %v1061 = vadd.f32 0.0, %v1060
        %1062 = vmatmul.bf16.gmra.mxu0 %v898
        %v1063 = vpop.f32.mrf.mxu0
        %v1064 = vadd.f32 0.0, %v1063
        %v1065 = vpop.f32.mrf.mxu0
        %v1066 = vadd.f32 0.0, %v1065
        %1067 = vmatmul.bf16.gmra.mxu0 %v900
        %v1068 = vpop.f32.mrf.mxu0
        %v1069 = vadd.f32 0.0, %v1068
        %v1070 = vpop.f32.mrf.mxu0
        %v1071 = vadd.f32 0.0, %v1070
        %1072 = vmatmul.bf16.gmra.mxu0 %v902
        %v1073 = vpop.f32.mrf.mxu0
        %v1074 = vadd.f32 0.0, %v1073
        %v1075 = vpop.f32.mrf.mxu0
        %v1076 = vadd.f32 0.0, %v1075
        %1077 = vmatmul.bf16.gmra.mxu0 %v904
        %v1078 = vpop.f32.mrf.mxu0
        %v1079 = vadd.f32 0.0, %v1078
        %v1080 = vpop.f32.mrf.mxu0
        %v1081 = vadd.f32 0.0, %v1080
        %1082 = vdwg.mxu0
        %1083 = vmatpush.bf16.msra.mxu0 %v1017
        %1084 = vmatpush.bf16.msra.mxu0 %v1016
        %1085 = vmatpush.bf16.msra.mxu0 %v1015
        %1086 = vmatpush.bf16.msra.mxu0 %v1014
        %1087 = vmatpush.bf16.msra.mxu0 %v1013
        %1088 = vmatpush.bf16.msra.mxu0 %v1012
        %1089 = vmatpush.bf16.msra.mxu0 %v1011
        %1090 = vmatpush.bf16.msra.mxu0 %v1010
        %1091 = vmatmul.bf16.gmra.mxu0 %v891
        %v1092 = vpop.f32.mrf.mxu0
        %v1093 = vadd.f32 %v1044, %v1092
        %v1094 = vpop.f32.mrf.mxu0
        %v1095 = vadd.f32 %v1046, %v1094
        %1096 = vmatmul.bf16.gmra.mxu0 %v893
        %v1097 = vpop.f32.mrf.mxu0
        %v1098 = vadd.f32 %v1049, %v1097
        %v1099 = vpop.f32.mrf.mxu0
        %v1100 = vadd.f32 %v1051, %v1099
        %1101 = vmatmul.bf16.gmra.mxu0 %v895
        %v1102 = vpop.f32.mrf.mxu0
        %v1103 = vadd.f32 %v1054, %v1102
        %v1104 = vpop.f32.mrf.mxu0
        %v1105 = vadd.f32 %v1056, %v1104
        %1106 = vmatmul.bf16.gmra.mxu0 %v897
        %v1107 = vpop.f32.mrf.mxu0
        %v1108 = vadd.f32 %v1059, %v1107
        %v1109 = vpop.f32.mrf.mxu0
        %v1110 = vadd.f32 %v1061, %v1109
        %1111 = vmatmul.bf16.gmra.mxu0 %v899
        %v1112 = vpop.f32.mrf.mxu0
        %v1113 = vadd.f32 %v1064, %v1112
        %v1114 = vpop.f32.mrf.mxu0
        %v1115 = vadd.f32 %v1066, %v1114
        %1116 = vmatmul.bf16.gmra.mxu0 %v901
        %v1117 = vpop.f32.mrf.mxu0
        %v1118 = vadd.f32 %v1069, %v1117
        %v1119 = vpop.f32.mrf.mxu0
        %v1120 = vadd.f32 %v1071, %v1119
        %1121 = vmatmul.bf16.gmra.mxu0 %v903
        %v1122 = vpop.f32.mrf.mxu0
        %v1123 = vadd.f32 %v1074, %v1122
        %v1124 = vpop.f32.mrf.mxu0
        %v1125 = vadd.f32 %v1076, %v1124
        %1126 = vmatmul.bf16.gmra.mxu0 %v905
        %v1127 = vpop.f32.mrf.mxu0
        %v1128 = vadd.f32 %v1079, %v1127
        %v1129 = vpop.f32.mrf.mxu0
        %v1130 = vadd.f32 %v1081, %v1129
        %1131 = vdwg.mxu0
        %v1132 = vld [vmem:[%s6] sm:$0xff]
        %v1133 = vadd.f32 %v1093, %v1132
        %v1134 = vadd.f32 %v1095, %v1132
        %v1135 = vadd.f32 %v1098, %v1132
        %v1136 = vadd.f32 %v1100, %v1132
        %v1137 = vadd.f32 %v1103, %v1132
        %v1138 = vadd.f32 %v1105, %v1132
        %v1139 = vadd.f32 %v1108, %v1132
        %v1140 = vadd.f32 %v1110, %v1132
        %v1141 = vadd.f32 %v1113, %v1132
        %v1142 = vadd.f32 %v1115, %v1132
        %v1143 = vadd.f32 %v1118, %v1132
        %v1144 = vadd.f32 %v1120, %v1132
        %v1145 = vadd.f32 %v1123, %v1132
        %v1146 = vadd.f32 %v1125, %v1132
        %v1147 = vadd.f32 %v1128, %v1132
        %v1148 = vadd.f32 %v1130, %v1132
        %vm1149 = vcmask 64512
        %v1150 = vsel %vm1149, %v1133, -inf
        %1151 = vmax.xlane.f32.xlu0 %v1150
        %v1152 = vpop.xlane.xlu0 %1151
        %v1153 = vsel %vm1149, %v1134, -inf
        %1154 = vmax.xlane.f32.xlu0 %v1153
        %v1155 = vpop.xlane.xlu0 %1154
        %v1156 = vsel %vm1149, %v1135, -inf
        %1157 = vmax.xlane.f32.xlu0 %v1156
        %v1158 = vpop.xlane.xlu0 %1157
        %v1159 = vsel %vm1149, %v1136, -inf
        %1160 = vmax.xlane.f32.xlu0 %v1159
        %v1161 = vpop.xlane.xlu0 %1160
        %v1162 = vsel %vm1149, %v1137, -inf
        %1163 = vmax.xlane.f32.xlu0 %v1162
        %v1164 = vpop.xlane.xlu0 %1163
        %v1165 = vsel %vm1149, %v1138, -inf
        %1166 = vmax.xlane.f32.xlu0 %v1165
        %v1167 = vpop.xlane.xlu0 %1166
        %v1168 = vsel %vm1149, %v1139, -inf
        %1169 = vmax.xlane.f32.xlu0 %v1168
        %v1170 = vpop.xlane.xlu0 %1169
        %v1171 = vsel %vm1149, %v1140, -inf
        %1172 = vmax.xlane.f32.xlu0 %v1171
        %v1173 = vpop.xlane.xlu0 %1172
        %v1174 = vsel %vm1149, %v1141, -inf
        %1175 = vmax.xlane.f32.xlu0 %v1174
        %v1176 = vpop.xlane.xlu0 %1175
        %v1177 = vsel %vm1149, %v1142, -inf
        %1178 = vmax.xlane.f32.xlu0 %v1177
        %v1179 = vpop.xlane.xlu0 %1178
        %v1180 = vsel %vm1149, %v1143, -inf
        %1181 = vmax.xlane.f32.xlu0 %v1180
        %v1182 = vpop.xlane.xlu0 %1181
        %v1183 = vsel %vm1149, %v1144, -inf
        %1184 = vmax.xlane.f32.xlu0 %v1183
        %v1185 = vpop.xlane.xlu0 %1184
        %v1186 = vsel %vm1149, %v1145, -inf
        %1187 = vmax.xlane.f32.xlu0 %v1186
        %v1188 = vpop.xlane.xlu0 %1187
        %v1189 = vsel %vm1149, %v1146, -inf
        %1190 = vmax.xlane.f32.xlu0 %v1189
        %v1191 = vpop.xlane.xlu0 %1190
        %v1192 = vsel %vm1149, %v1147, -inf
        %1193 = vmax.xlane.f32.xlu0 %v1192
        %v1194 = vpop.xlane.xlu0 %1193
        %v1195 = vsel %vm1149, %v1148, -inf
        %1196 = vmax.xlane.f32.xlu0 %v1195
        %v1197 = vpop.xlane.xlu0 %1196
        %v1198 = vsub.f32 %v1133, %v1152
        %v1199 = vsub.f32 %v1134, %v1155
        %v1200 = vsub.f32 %v1135, %v1158
        %v1201 = vsub.f32 %v1136, %v1161
        %v1202 = vsub.f32 %v1137, %v1164
        %v1203 = vsub.f32 %v1138, %v1167
        %v1204 = vsub.f32 %v1139, %v1170
        %v1205 = vsub.f32 %v1140, %v1173
        %v1206 = vsub.f32 %v1141, %v1176
        %v1207 = vsub.f32 %v1142, %v1179
        %v1208 = vsub.f32 %v1143, %v1182
        %v1209 = vsub.f32 %v1144, %v1185
        %v1210 = vsub.f32 %v1145, %v1188
        %v1211 = vsub.f32 %v1146, %v1191
        %v1212 = vsub.f32 %v1147, %v1194
        %v1213 = vsub.f32 %v1148, %v1197
        %v1214 = vmul.f32 %v1198, 1.442695
        %v1215 = vpow.pop %v1214
        %v1216 = vmul.f32 %v1199, 1.442695
        %v1217 = vpow.pop %v1216
        %v1218 = vmul.f32 %v1200, 1.442695
        %v1219 = vpow.pop %v1218
        %v1220 = vmul.f32 %v1201, 1.442695
        %v1221 = vpow.pop %v1220
        %v1222 = vmul.f32 %v1202, 1.442695
        %v1223 = vpow.pop %v1222
        %v1224 = vmul.f32 %v1203, 1.442695
        %v1225 = vpow.pop %v1224
        %v1226 = vmul.f32 %v1204, 1.442695
        %v1227 = vpow.pop %v1226
        %v1228 = vmul.f32 %v1205, 1.442695
        %v1229 = vpow.pop %v1228
        %v1230 = vmul.f32 %v1206, 1.442695
        %v1231 = vpow.pop %v1230
        %v1232 = vmul.f32 %v1207, 1.442695
        %v1233 = vpow.pop %v1232
        %v1234 = vmul.f32 %v1208, 1.442695
        %v1235 = vpow.pop %v1234
        %v1236 = vmul.f32 %v1209, 1.442695
        %v1237 = vpow.pop %v1236
        %v1238 = vmul.f32 %v1210, 1.442695
        %v1239 = vpow.pop %v1238
        %v1240 = vmul.f32 %v1211, 1.442695
        %v1241 = vpow.pop %v1240
        %v1242 = vmul.f32 %v1212, 1.442695
        %v1243 = vpow.pop %v1242
        %v1244 = vmul.f32 %v1213, 1.442695
        %v1245 = vpow.pop %v1244
        %v1246 = vsel %vm1149, %v1215, 0.0
        %1247 = vadd.xlane.f32.xlu0 %v1246
        %v1248 = vpop.xlane.xlu0 %1247
        %v1249 = vsel %vm1149, %v1217, 0.0
        %1250 = vadd.xlane.f32.xlu0 %v1249
        %v1251 = vpop.xlane.xlu0 %1250
        %v1252 = vsel %vm1149, %v1219, 0.0
        %1253 = vadd.xlane.f32.xlu0 %v1252
        %v1254 = vpop.xlane.xlu0 %1253
        %v1255 = vsel %vm1149, %v1221, 0.0
        %1256 = vadd.xlane.f32.xlu0 %v1255
        %v1257 = vpop.xlane.xlu0 %1256
        %v1258 = vsel %vm1149, %v1223, 0.0
        %1259 = vadd.xlane.f32.xlu0 %v1258
        %v1260 = vpop.xlane.xlu0 %1259
        %v1261 = vsel %vm1149, %v1225, 0.0
        %1262 = vadd.xlane.f32.xlu0 %v1261
        %v1263 = vpop.xlane.xlu0 %1262
        %v1264 = vsel %vm1149, %v1227, 0.0
        %1265 = vadd.xlane.f32.xlu0 %v1264
        %v1266 = vpop.xlane.xlu0 %1265
        %v1267 = vsel %vm1149, %v1229, 0.0
        %1268 = vadd.xlane.f32.xlu0 %v1267
        %v1269 = vpop.xlane.xlu0 %1268
        %v1270 = vsel %vm1149, %v1231, 0.0
        %1271 = vadd.xlane.f32.xlu0 %v1270
        %v1272 = vpop.xlane.xlu0 %1271
        %v1273 = vsel %vm1149, %v1233, 0.0
        %1274 = vadd.xlane.f32.xlu0 %v1273
        %v1275 = vpop.xlane.xlu0 %1274
        %v1276 = vsel %vm1149, %v1235, 0.0
        %1277 = vadd.xlane.f32.xlu0 %v1276
        %v1278 = vpop.xlane.xlu0 %1277
        %v1279 = vsel %vm1149, %v1237, 0.0
        %1280 = vadd.xlane.f32.xlu0 %v1279
        %v1281 = vpop.xlane.xlu0 %1280
        %v1282 = vsel %vm1149, %v1239, 0.0
        %1283 = vadd.xlane.f32.xlu0 %v1282
        %v1284 = vpop.xlane.xlu0 %1283
        %v1285 = vsel %vm1149, %v1241, 0.0
        %1286 = vadd.xlane.f32.xlu0 %v1285
        %v1287 = vpop.xlane.xlu0 %1286
        %v1288 = vsel %vm1149, %v1243, 0.0
        %1289 = vadd.xlane.f32.xlu0 %v1288
        %v1290 = vpop.xlane.xlu0 %1289
        %v1291 = vsel %vm1149, %v1245, 0.0
        %1292 = vadd.xlane.f32.xlu0 %v1291
        %v1293 = vpop.xlane.xlu0 %1292
        %v1294 = vrcp.pop %v1248
        %v1295 = vmul.f32 %v1248, %v1294
        %v1296 = vsub.f32 1.0, %v1295
        %v1297 = vmul.f32 %v1294, %v1296
        %v1298 = vadd.f32 %v1294, %v1297
        %vm1299 = vweird.f32 %v1248
        %vm1300 = vweird.f32 %v1294
        %vm1301 = vmor %vm1299, %vm1300
        %v1302 = vsel %vm1301, %v1294, %v1298
        %v1303 = vand.u32 2147483647, %v1248
        %vm1304 = vcmp.eq.f32.partialorder %v1303, 8.507059e+37
        %v1305 = vand.u32 %v1248, 2147483648
        %v1306 = vor.u32 1.1754944e-38, %v1305
        %v1307 = vsel %vm1304, %v1306, %v1302
        %v1308 = vmul.f32 %v1215, %v1307
        %v1309 = vrcp.pop %v1251
        %v1310 = vmul.f32 %v1251, %v1309
        %v1311 = vsub.f32 1.0, %v1310
        %v1312 = vmul.f32 %v1309, %v1311
        %v1313 = vadd.f32 %v1309, %v1312
        %vm1314 = vweird.f32 %v1251
        %vm1315 = vweird.f32 %v1309
        %vm1316 = vmor %vm1314, %vm1315
        %v1317 = vsel %vm1316, %v1309, %v1313
        %v1318 = vand.u32 2147483647, %v1251
        %vm1319 = vcmp.eq.f32.partialorder %v1318, 8.507059e+37
        %v1320 = vand.u32 %v1251, 2147483648
        %v1321 = vor.u32 1.1754944e-38, %v1320
        %v1322 = vsel %vm1319, %v1321, %v1317
        %v1323 = vmul.f32 %v1217, %v1322
        %v1324 = vrcp.pop %v1254
        %v1325 = vmul.f32 %v1254, %v1324
        %v1326 = vsub.f32 1.0, %v1325
        %v1327 = vmul.f32 %v1324, %v1326
        %v1328 = vadd.f32 %v1324, %v1327
        %vm1329 = vweird.f32 %v1254
        %vm1330 = vweird.f32 %v1324
        %vm1331 = vmor %vm1329, %vm1330
        %v1332 = vsel %vm1331, %v1324, %v1328
        %v1333 = vand.u32 2147483647, %v1254
        %vm1334 = vcmp.eq.f32.partialorder %v1333, 8.507059e+37
        %v1335 = vand.u32 %v1254, 2147483648
        %v1336 = vor.u32 1.1754944e-38, %v1335
        %v1337 = vsel %vm1334, %v1336, %v1332
        %v1338 = vmul.f32 %v1219, %v1337
        %v1339 = vrcp.pop %v1257
        %v1340 = vmul.f32 %v1257, %v1339
        %v1341 = vsub.f32 1.0, %v1340
        %v1342 = vmul.f32 %v1339, %v1341
        %v1343 = vadd.f32 %v1339, %v1342
        %vm1344 = vweird.f32 %v1257
        %vm1345 = vweird.f32 %v1339
        %vm1346 = vmor %vm1344, %vm1345
        %v1347 = vsel %vm1346, %v1339, %v1343
        %v1348 = vand.u32 2147483647, %v1257
        %vm1349 = vcmp.eq.f32.partialorder %v1348, 8.507059e+37
        %v1350 = vand.u32 %v1257, 2147483648
        %v1351 = vor.u32 1.1754944e-38, %v1350
        %v1352 = vsel %vm1349, %v1351, %v1347
        %v1353 = vmul.f32 %v1221, %v1352
        %v1354 = vrcp.pop %v1260
        %v1355 = vmul.f32 %v1260, %v1354
        %v1356 = vsub.f32 1.0, %v1355
        %v1357 = vmul.f32 %v1354, %v1356
        %v1358 = vadd.f32 %v1354, %v1357
        %vm1359 = vweird.f32 %v1260
        %vm1360 = vweird.f32 %v1354
        %vm1361 = vmor %vm1359, %vm1360
        %v1362 = vsel %vm1361, %v1354, %v1358
        %v1363 = vand.u32 2147483647, %v1260
        %vm1364 = vcmp.eq.f32.partialorder %v1363, 8.507059e+37
        %v1365 = vand.u32 %v1260, 2147483648
        %v1366 = vor.u32 1.1754944e-38, %v1365
        %v1367 = vsel %vm1364, %v1366, %v1362
        %v1368 = vmul.f32 %v1223, %v1367
        %v1369 = vrcp.pop %v1263
        %v1370 = vmul.f32 %v1263, %v1369
        %v1371 = vsub.f32 1.0, %v1370
        %v1372 = vmul.f32 %v1369, %v1371
        %v1373 = vadd.f32 %v1369, %v1372
        %vm1374 = vweird.f32 %v1263
        %vm1375 = vweird.f32 %v1369
        %vm1376 = vmor %vm1374, %vm1375
        %v1377 = vsel %vm1376, %v1369, %v1373
        %v1378 = vand.u32 2147483647, %v1263
        %vm1379 = vcmp.eq.f32.partialorder %v1378, 8.507059e+37
        %v1380 = vand.u32 %v1263, 2147483648
        %v1381 = vor.u32 1.1754944e-38, %v1380
        %v1382 = vsel %vm1379, %v1381, %v1377
        %v1383 = vmul.f32 %v1225, %v1382
        %v1384 = vrcp.pop %v1266
        %v1385 = vmul.f32 %v1266, %v1384
        %v1386 = vsub.f32 1.0, %v1385
        %v1387 = vmul.f32 %v1384, %v1386
        %v1388 = vadd.f32 %v1384, %v1387
        %vm1389 = vweird.f32 %v1266
        %vm1390 = vweird.f32 %v1384
        %vm1391 = vmor %vm1389, %vm1390
        %v1392 = vsel %vm1391, %v1384, %v1388
        %v1393 = vand.u32 2147483647, %v1266
        %vm1394 = vcmp.eq.f32.partialorder %v1393, 8.507059e+37
        %v1395 = vand.u32 %v1266, 2147483648
        %v1396 = vor.u32 1.1754944e-38, %v1395
        %v1397 = vsel %vm1394, %v1396, %v1392
        %v1398 = vmul.f32 %v1227, %v1397
        %v1399 = vrcp.pop %v1269
        %v1400 = vmul.f32 %v1269, %v1399
        %v1401 = vsub.f32 1.0, %v1400
        %v1402 = vmul.f32 %v1399, %v1401
        %v1403 = vadd.f32 %v1399, %v1402
        %vm1404 = vweird.f32 %v1269
        %vm1405 = vweird.f32 %v1399
        %vm1406 = vmor %vm1404, %vm1405
        %v1407 = vsel %vm1406, %v1399, %v1403
        %v1408 = vand.u32 2147483647, %v1269
        %vm1409 = vcmp.eq.f32.partialorder %v1408, 8.507059e+37
        %v1410 = vand.u32 %v1269, 2147483648
        %v1411 = vor.u32 1.1754944e-38, %v1410
        %v1412 = vsel %vm1409, %v1411, %v1407
        %v1413 = vmul.f32 %v1229, %v1412
        %v1414 = vrcp.pop %v1272
        %v1415 = vmul.f32 %v1272, %v1414
        %v1416 = vsub.f32 1.0, %v1415
        %v1417 = vmul.f32 %v1414, %v1416
        %v1418 = vadd.f32 %v1414, %v1417
        %vm1419 = vweird.f32 %v1272
        %vm1420 = vweird.f32 %v1414
        %vm1421 = vmor %vm1419, %vm1420
        %v1422 = vsel %vm1421, %v1414, %v1418
        %v1423 = vand.u32 2147483647, %v1272
        %vm1424 = vcmp.eq.f32.partialorder %v1423, 8.507059e+37
        %v1425 = vand.u32 %v1272, 2147483648
        %v1426 = vor.u32 1.1754944e-38, %v1425
        %v1427 = vsel %vm1424, %v1426, %v1422
        %v1428 = vmul.f32 %v1231, %v1427
        %v1429 = vrcp.pop %v1275
        %v1430 = vmul.f32 %v1275, %v1429
        %v1431 = vsub.f32 1.0, %v1430
        %v1432 = vmul.f32 %v1429, %v1431
        %v1433 = vadd.f32 %v1429, %v1432
        %vm1434 = vweird.f32 %v1275
        %vm1435 = vweird.f32 %v1429
        %vm1436 = vmor %vm1434, %vm1435
        %v1437 = vsel %vm1436, %v1429, %v1433
        %v1438 = vand.u32 2147483647, %v1275
        %vm1439 = vcmp.eq.f32.partialorder %v1438, 8.507059e+37
        %v1440 = vand.u32 %v1275, 2147483648
        %v1441 = vor.u32 1.1754944e-38, %v1440
        %v1442 = vsel %vm1439, %v1441, %v1437
        %v1443 = vmul.f32 %v1233, %v1442
        %v1444 = vrcp.pop %v1278
        %v1445 = vmul.f32 %v1278, %v1444
        %v1446 = vsub.f32 1.0, %v1445
        %v1447 = vmul.f32 %v1444, %v1446
        %v1448 = vadd.f32 %v1444, %v1447
        %vm1449 = vweird.f32 %v1278
        %vm1450 = vweird.f32 %v1444
        %vm1451 = vmor %vm1449, %vm1450
        %v1452 = vsel %vm1451, %v1444, %v1448
        %v1453 = vand.u32 2147483647, %v1278
        %vm1454 = vcmp.eq.f32.partialorder %v1453, 8.507059e+37
        %v1455 = vand.u32 %v1278, 2147483648
        %v1456 = vor.u32 1.1754944e-38, %v1455
        %v1457 = vsel %vm1454, %v1456, %v1452
        %v1458 = vmul.f32 %v1235, %v1457
        %v1459 = vrcp.pop %v1281
        %v1460 = vmul.f32 %v1281, %v1459
        %v1461 = vsub.f32 1.0, %v1460
        %v1462 = vmul.f32 %v1459, %v1461
        %v1463 = vadd.f32 %v1459, %v1462
        %vm1464 = vweird.f32 %v1281
        %vm1465 = vweird.f32 %v1459
        %vm1466 = vmor %vm1464, %vm1465
        %v1467 = vsel %vm1466, %v1459, %v1463
        %v1468 = vand.u32 2147483647, %v1281
        %vm1469 = vcmp.eq.f32.partialorder %v1468, 8.507059e+37
        %v1470 = vand.u32 %v1281, 2147483648
        %v1471 = vor.u32 1.1754944e-38, %v1470
        %v1472 = vsel %vm1469, %v1471, %v1467
        %v1473 = vmul.f32 %v1237, %v1472
        %v1474 = vrcp.pop %v1284
        %v1475 = vmul.f32 %v1284, %v1474
        %v1476 = vsub.f32 1.0, %v1475
        %v1477 = vmul.f32 %v1474, %v1476
        %v1478 = vadd.f32 %v1474, %v1477
        %vm1479 = vweird.f32 %v1284
        %vm1480 = vweird.f32 %v1474
        %vm1481 = vmor %vm1479, %vm1480
        %v1482 = vsel %vm1481, %v1474, %v1478
        %v1483 = vand.u32 2147483647, %v1284
        %vm1484 = vcmp.eq.f32.partialorder %v1483, 8.507059e+37
        %v1485 = vand.u32 %v1284, 2147483648
        %v1486 = vor.u32 1.1754944e-38, %v1485
        %v1487 = vsel %vm1484, %v1486, %v1482
        %v1488 = vmul.f32 %v1239, %v1487
        %v1489 = vrcp.pop %v1287
        %v1490 = vmul.f32 %v1287, %v1489
        %v1491 = vsub.f32 1.0, %v1490
        %v1492 = vmul.f32 %v1489, %v1491
        %v1493 = vadd.f32 %v1489, %v1492
        %vm1494 = vweird.f32 %v1287
        %vm1495 = vweird.f32 %v1489
        %vm1496 = vmor %vm1494, %vm1495
        %v1497 = vsel %vm1496, %v1489, %v1493
        %v1498 = vand.u32 2147483647, %v1287
        %vm1499 = vcmp.eq.f32.partialorder %v1498, 8.507059e+37
        %v1500 = vand.u32 %v1287, 2147483648
        %v1501 = vor.u32 1.1754944e-38, %v1500
        %v1502 = vsel %vm1499, %v1501, %v1497
        %v1503 = vmul.f32 %v1241, %v1502
        %v1504 = vrcp.pop %v1290
        %v1505 = vmul.f32 %v1290, %v1504
        %v1506 = vsub.f32 1.0, %v1505
        %v1507 = vmul.f32 %v1504, %v1506
        %v1508 = vadd.f32 %v1504, %v1507
        %vm1509 = vweird.f32 %v1290
        %vm1510 = vweird.f32 %v1504
        %vm1511 = vmor %vm1509, %vm1510
        %v1512 = vsel %vm1511, %v1504, %v1508
        %v1513 = vand.u32 2147483647, %v1290
        %vm1514 = vcmp.eq.f32.partialorder %v1513, 8.507059e+37
        %v1515 = vand.u32 %v1290, 2147483648
        %v1516 = vor.u32 1.1754944e-38, %v1515
        %v1517 = vsel %vm1514, %v1516, %v1512
        %v1518 = vmul.f32 %v1243, %v1517
        %v1519 = vrcp.pop %v1293
        %v1520 = vmul.f32 %v1293, %v1519
        %v1521 = vsub.f32 1.0, %v1520
        %v1522 = vmul.f32 %v1519, %v1521
        %v1523 = vadd.f32 %v1519, %v1522
        %vm1524 = vweird.f32 %v1293
        %vm1525 = vweird.f32 %v1519
        %vm1526 = vmor %vm1524, %vm1525
        %v1527 = vsel %vm1526, %v1519, %v1523
        %v1528 = vand.u32 2147483647, %v1293
        %vm1529 = vcmp.eq.f32.partialorder %v1528, 8.507059e+37
        %v1530 = vand.u32 %v1293, 2147483648
        %v1531 = vor.u32 1.1754944e-38, %v1530
        %v1532 = vsel %vm1529, %v1531, %v1527
        %v1533 = vmul.f32 %v1245, %v1532
        %1535 = vset.pattern.permute.xlu0 0
        %1536 = vperm.xlu0 %1535, %v1308
        %v1537 = vpop.permute.xlu0 %1536
        %1540 = vset.pattern.permute.xlu0 0
        %1541 = vperm.xlu0 %1540, %v1323
        %v1542 = vpop.permute.xlu0 %1541
        %1545 = vset.pattern.permute.xlu0 0
        %1546 = vperm.xlu0 %1545, %v1338
        %v1547 = vpop.permute.xlu0 %1546
        %1550 = vset.pattern.permute.xlu0 0
        %1551 = vperm.xlu0 %1550, %v1353
        %v1552 = vpop.permute.xlu0 %1551
        %1555 = vset.pattern.permute.xlu0 0
        %1556 = vperm.xlu0 %1555, %v1368
        %v1557 = vpop.permute.xlu0 %1556
        %1560 = vset.pattern.permute.xlu0 0
        %1561 = vperm.xlu0 %1560, %v1383
        %v1562 = vpop.permute.xlu0 %1561
        %1565 = vset.pattern.permute.xlu0 0
        %1566 = vperm.xlu0 %1565, %v1398
        %v1567 = vpop.permute.xlu0 %1566
        %1570 = vset.pattern.permute.xlu0 0
        %1571 = vperm.xlu0 %1570, %v1413
        %v1572 = vpop.permute.xlu0 %1571
        %1575 = vset.pattern.permute.xlu0 0
        %1576 = vperm.xlu0 %1575, %v1428
        %v1577 = vpop.permute.xlu0 %1576
        %1580 = vset.pattern.permute.xlu0 0
        %1581 = vperm.xlu0 %1580, %v1443
        %v1582 = vpop.permute.xlu0 %1581
        %1585 = vset.pattern.permute.xlu0 0
        %1586 = vperm.xlu0 %1585, %v1458
        %v1587 = vpop.permute.xlu0 %1586
        %1590 = vset.pattern.permute.xlu0 0
        %1591 = vperm.xlu0 %1590, %v1473
        %v1592 = vpop.permute.xlu0 %1591
        %1595 = vset.pattern.permute.xlu0 0
        %1596 = vperm.xlu0 %1595, %v1488
        %v1597 = vpop.permute.xlu0 %1596
        %1600 = vset.pattern.permute.xlu0 0
        %1601 = vperm.xlu0 %1600, %v1503
        %v1602 = vpop.permute.xlu0 %1601
        %1605 = vset.pattern.permute.xlu0 0
        %1606 = vperm.xlu0 %1605, %v1518
        %v1607 = vpop.permute.xlu0 %1606
        %1610 = vset.pattern.permute.xlu0 0
        %1611 = vperm.xlu0 %1610, %v1533
        %v1612 = vpop.permute.xlu0 %1611
        %v1614 = vperm.slane %v357, 0
        %v1615 = vperm.slane %v358, 0
        %v1616 = vperm.slane %v359, 0
        %v1617 = vperm.slane %v360, 0
        %v1618 = vperm.slane %v361, 0
        %v1619 = vperm.slane %v362, 0
        %v1620 = vperm.slane %v363, 0
        %v1621 = vperm.slane %v364, 0
        %v1622 = vperm.slane %v365, 0
        %v1623 = vperm.slane %v366, 0
        %v1624 = vperm.slane %v367, 0
        %v1625 = vperm.slane %v368, 0
        %v1626 = vperm.slane %v369, 0
        %v1627 = vperm.slane %v370, 0
        %v1628 = vperm.slane %v371, 0
        %v1629 = vperm.slane %v372, 0
        %v1630 = vmul.f32 %v1537, %v1614
        %v1631 = vmul.f32 %v1542, %v1615
        %v1632 = vmul.f32 %v1547, %v1616
        %v1633 = vmul.f32 %v1552, %v1617
        %v1634 = vmul.f32 %v1557, %v1618
        %v1635 = vmul.f32 %v1562, %v1619
        %v1636 = vmul.f32 %v1567, %v1620
        %v1637 = vmul.f32 %v1572, %v1621
        %v1638 = vmul.f32 %v1577, %v1622
        %v1639 = vmul.f32 %v1582, %v1623
        %v1640 = vmul.f32 %v1587, %v1624
        %v1641 = vmul.f32 %v1592, %v1625
        %v1642 = vmul.f32 %v1597, %v1626
        %v1643 = vmul.f32 %v1602, %v1627
        %v1644 = vmul.f32 %v1607, %v1628
        %v1645 = vmul.f32 %v1612, %v1629
        %v1646 = vadd.f32 %v1630, 0.0
        %v1647 = vadd.f32 %v1631, 0.0
        %v1648 = vadd.f32 %v1632, 0.0
        %v1649 = vadd.f32 %v1633, 0.0
        %v1650 = vadd.f32 %v1634, 0.0
        %v1651 = vadd.f32 %v1635, 0.0
        %v1652 = vadd.f32 %v1636, 0.0
        %v1653 = vadd.f32 %v1637, 0.0
        %v1654 = vadd.f32 %v1638, 0.0
        %v1655 = vadd.f32 %v1639, 0.0
        %v1656 = vadd.f32 %v1640, 0.0
        %v1657 = vadd.f32 %v1641, 0.0
        %v1658 = vadd.f32 %v1642, 0.0
        %v1659 = vadd.f32 %v1643, 0.0
        %v1660 = vadd.f32 %v1644, 0.0
        %v1661 = vadd.f32 %v1645, 0.0
        %1662 = vset.pattern.permute.xlu0 1
        %1663 = vperm.xlu0 %1662, %v1308
        %v1664 = vpop.permute.xlu0 %1663
        %1666 = vset.pattern.permute.xlu0 1
        %1667 = vperm.xlu0 %1666, %v1323
        %v1668 = vpop.permute.xlu0 %1667
        %1670 = vset.pattern.permute.xlu0 1
        %1671 = vperm.xlu0 %1670, %v1338
        %v1672 = vpop.permute.xlu0 %1671
        %1674 = vset.pattern.permute.xlu0 1
        %1675 = vperm.xlu0 %1674, %v1353
        %v1676 = vpop.permute.xlu0 %1675
        %1678 = vset.pattern.permute.xlu0 1
        %1679 = vperm.xlu0 %1678, %v1368
        %v1680 = vpop.permute.xlu0 %1679
        %1682 = vset.pattern.permute.xlu0 1
        %1683 = vperm.xlu0 %1682, %v1383
        %v1684 = vpop.permute.xlu0 %1683
        %1686 = vset.pattern.permute.xlu0 1
        %1687 = vperm.xlu0 %1686, %v1398
        %v1688 = vpop.permute.xlu0 %1687
        %1690 = vset.pattern.permute.xlu0 1
        %1691 = vperm.xlu0 %1690, %v1413
        %v1692 = vpop.permute.xlu0 %1691
        %1694 = vset.pattern.permute.xlu0 1
        %1695 = vperm.xlu0 %1694, %v1428
        %v1696 = vpop.permute.xlu0 %1695
        %1698 = vset.pattern.permute.xlu0 1
        %1699 = vperm.xlu0 %1698, %v1443
        %v1700 = vpop.permute.xlu0 %1699
        %1702 = vset.pattern.permute.xlu0 1
        %1703 = vperm.xlu0 %1702, %v1458
        %v1704 = vpop.permute.xlu0 %1703
        %1706 = vset.pattern.permute.xlu0 1
        %1707 = vperm.xlu0 %1706, %v1473
        %v1708 = vpop.permute.xlu0 %1707
        %1710 = vset.pattern.permute.xlu0 1
        %1711 = vperm.xlu0 %1710, %v1488
        %v1712 = vpop.permute.xlu0 %1711
        %1714 = vset.pattern.permute.xlu0 1
        %1715 = vperm.xlu0 %1714, %v1503
        %v1716 = vpop.permute.xlu0 %1715
        %1718 = vset.pattern.permute.xlu0 1
        %1719 = vperm.xlu0 %1718, %v1518
        %v1720 = vpop.permute.xlu0 %1719
        %1722 = vset.pattern.permute.xlu0 1
        %1723 = vperm.xlu0 %1722, %v1533
        %v1724 = vpop.permute.xlu0 %1723
        %v1726 = vperm.slane %v357, 1
        %v1727 = vperm.slane %v358, 1
        %v1728 = vperm.slane %v359, 1
        %v1729 = vperm.slane %v360, 1
        %v1730 = vperm.slane %v361, 1
        %v1731 = vperm.slane %v362, 1
        %v1732 = vperm.slane %v363, 1
        %v1733 = vperm.slane %v364, 1
        %v1734 = vperm.slane %v365, 1
        %v1735 = vperm.slane %v366, 1
        %v1736 = vperm.slane %v367, 1
        %v1737 = vperm.slane %v368, 1
        %v1738 = vperm.slane %v369, 1
        %v1739 = vperm.slane %v370, 1
        %v1740 = vperm.slane %v371, 1
        %v1741 = vperm.slane %v372, 1
        %v1742 = vmul.f32 %v1664, %v1726
        %v1743 = vmul.f32 %v1668, %v1727
        %v1744 = vmul.f32 %v1672, %v1728
        %v1745 = vmul.f32 %v1676, %v1729
        %v1746 = vmul.f32 %v1680, %v1730
        %v1747 = vmul.f32 %v1684, %v1731
        %v1748 = vmul.f32 %v1688, %v1732
        %v1749 = vmul.f32 %v1692, %v1733
        %v1750 = vmul.f32 %v1696, %v1734
        %v1751 = vmul.f32 %v1700, %v1735
        %v1752 = vmul.f32 %v1704, %v1736
        %v1753 = vmul.f32 %v1708, %v1737
        %v1754 = vmul.f32 %v1712, %v1738
        %v1755 = vmul.f32 %v1716, %v1739
        %v1756 = vmul.f32 %v1720, %v1740
        %v1757 = vmul.f32 %v1724, %v1741
        %v1758 = vadd.f32 %v1646, %v1742
        %v1759 = vadd.f32 %v1647, %v1743
        %v1760 = vadd.f32 %v1648, %v1744
        %v1761 = vadd.f32 %v1649, %v1745
        %v1762 = vadd.f32 %v1650, %v1746
        %v1763 = vadd.f32 %v1651, %v1747
        %v1764 = vadd.f32 %v1652, %v1748
        %v1765 = vadd.f32 %v1653, %v1749
        %v1766 = vadd.f32 %v1654, %v1750
        %v1767 = vadd.f32 %v1655, %v1751
        %v1768 = vadd.f32 %v1656, %v1752
        %v1769 = vadd.f32 %v1657, %v1753
        %v1770 = vadd.f32 %v1658, %v1754
        %v1771 = vadd.f32 %v1659, %v1755
        %v1772 = vadd.f32 %v1660, %v1756
        %v1773 = vadd.f32 %v1661, %v1757
        %1774 = vset.pattern.permute.xlu0 2
        %1775 = vperm.xlu0 %1774, %v1308
        %v1776 = vpop.permute.xlu0 %1775
        %1778 = vset.pattern.permute.xlu0 2
        %1779 = vperm.xlu0 %1778, %v1323
        %v1780 = vpop.permute.xlu0 %1779
        %1782 = vset.pattern.permute.xlu0 2
        %1783 = vperm.xlu0 %1782, %v1338
        %v1784 = vpop.permute.xlu0 %1783
        %1786 = vset.pattern.permute.xlu0 2
        %1787 = vperm.xlu0 %1786, %v1353
        %v1788 = vpop.permute.xlu0 %1787
        %1790 = vset.pattern.permute.xlu0 2
        %1791 = vperm.xlu0 %1790, %v1368
        %v1792 = vpop.permute.xlu0 %1791
        %1794 = vset.pattern.permute.xlu0 2
        %1795 = vperm.xlu0 %1794, %v1383
        %v1796 = vpop.permute.xlu0 %1795
        %1798 = vset.pattern.permute.xlu0 2
        %1799 = vperm.xlu0 %1798, %v1398
        %v1800 = vpop.permute.xlu0 %1799
        %1802 = vset.pattern.permute.xlu0 2
        %1803 = vperm.xlu0 %1802, %v1413
        %v1804 = vpop.permute.xlu0 %1803
        %1806 = vset.pattern.permute.xlu0 2
        %1807 = vperm.xlu0 %1806, %v1428
        %v1808 = vpop.permute.xlu0 %1807
        %1810 = vset.pattern.permute.xlu0 2
        %1811 = vperm.xlu0 %1810, %v1443
        %v1812 = vpop.permute.xlu0 %1811
        %1814 = vset.pattern.permute.xlu0 2
        %1815 = vperm.xlu0 %1814, %v1458
        %v1816 = vpop.permute.xlu0 %1815
        %1818 = vset.pattern.permute.xlu0 2
        %1819 = vperm.xlu0 %1818, %v1473
        %v1820 = vpop.permute.xlu0 %1819
        %1822 = vset.pattern.permute.xlu0 2
        %1823 = vperm.xlu0 %1822, %v1488
        %v1824 = vpop.permute.xlu0 %1823
        %1826 = vset.pattern.permute.xlu0 2
        %1827 = vperm.xlu0 %1826, %v1503
        %v1828 = vpop.permute.xlu0 %1827
        %1830 = vset.pattern.permute.xlu0 2
        %1831 = vperm.xlu0 %1830, %v1518
        %v1832 = vpop.permute.xlu0 %1831
        %1834 = vset.pattern.permute.xlu0 2
        %1835 = vperm.xlu0 %1834, %v1533
        %v1836 = vpop.permute.xlu0 %1835
        %v1838 = vperm.slane %v357, 2
        %v1839 = vperm.slane %v358, 2
        %v1840 = vperm.slane %v359, 2
        %v1841 = vperm.slane %v360, 2
        %v1842 = vperm.slane %v361, 2
        %v1843 = vperm.slane %v362, 2
        %v1844 = vperm.slane %v363, 2
        %v1845 = vperm.slane %v364, 2
        %v1846 = vperm.slane %v365, 2
        %v1847 = vperm.slane %v366, 2
        %v1848 = vperm.slane %v367, 2
        %v1849 = vperm.slane %v368, 2
        %v1850 = vperm.slane %v369, 2
        %v1851 = vperm.slane %v370, 2
        %v1852 = vperm.slane %v371, 2
        %v1853 = vperm.slane %v372, 2
        %v1854 = vmul.f32 %v1776, %v1838
        %v1855 = vmul.f32 %v1780, %v1839
        %v1856 = vmul.f32 %v1784, %v1840
        %v1857 = vmul.f32 %v1788, %v1841
        %v1858 = vmul.f32 %v1792, %v1842
        %v1859 = vmul.f32 %v1796, %v1843
        %v1860 = vmul.f32 %v1800, %v1844
        %v1861 = vmul.f32 %v1804, %v1845
        %v1862 = vmul.f32 %v1808, %v1846
        %v1863 = vmul.f32 %v1812, %v1847
        %v1864 = vmul.f32 %v1816, %v1848
        %v1865 = vmul.f32 %v1820, %v1849
        %v1866 = vmul.f32 %v1824, %v1850
        %v1867 = vmul.f32 %v1828, %v1851
        %v1868 = vmul.f32 %v1832, %v1852
        %v1869 = vmul.f32 %v1836, %v1853
        %v1870 = vadd.f32 %v1758, %v1854
        %v1871 = vadd.f32 %v1759, %v1855
        %v1872 = vadd.f32 %v1760, %v1856
        %v1873 = vadd.f32 %v1761, %v1857
        %v1874 = vadd.f32 %v1762, %v1858
        %v1875 = vadd.f32 %v1763, %v1859
        %v1876 = vadd.f32 %v1764, %v1860
        %v1877 = vadd.f32 %v1765, %v1861
        %v1878 = vadd.f32 %v1766, %v1862
        %v1879 = vadd.f32 %v1767, %v1863
        %v1880 = vadd.f32 %v1768, %v1864
        %v1881 = vadd.f32 %v1769, %v1865
        %v1882 = vadd.f32 %v1770, %v1866
        %v1883 = vadd.f32 %v1771, %v1867
        %v1884 = vadd.f32 %v1772, %v1868
        %v1885 = vadd.f32 %v1773, %v1869
        %1886 = vset.pattern.permute.xlu0 3
        %1887 = vperm.xlu0 %1886, %v1308
        %v1888 = vpop.permute.xlu0 %1887
        %1890 = vset.pattern.permute.xlu0 3
        %1891 = vperm.xlu0 %1890, %v1323
        %v1892 = vpop.permute.xlu0 %1891
        %1894 = vset.pattern.permute.xlu0 3
        %1895 = vperm.xlu0 %1894, %v1338
        %v1896 = vpop.permute.xlu0 %1895
        %1898 = vset.pattern.permute.xlu0 3
        %1899 = vperm.xlu0 %1898, %v1353
        %v1900 = vpop.permute.xlu0 %1899
        %1902 = vset.pattern.permute.xlu0 3
        %1903 = vperm.xlu0 %1902, %v1368
        %v1904 = vpop.permute.xlu0 %1903
        %1906 = vset.pattern.permute.xlu0 3
        %1907 = vperm.xlu0 %1906, %v1383
        %v1908 = vpop.permute.xlu0 %1907
        %1910 = vset.pattern.permute.xlu0 3
        %1911 = vperm.xlu0 %1910, %v1398
        %v1912 = vpop.permute.xlu0 %1911
        %1914 = vset.pattern.permute.xlu0 3
        %1915 = vperm.xlu0 %1914, %v1413
        %v1916 = vpop.permute.xlu0 %1915
        %1918 = vset.pattern.permute.xlu0 3
        %1919 = vperm.xlu0 %1918, %v1428
        %v1920 = vpop.permute.xlu0 %1919
        %1922 = vset.pattern.permute.xlu0 3
        %1923 = vperm.xlu0 %1922, %v1443
        %v1924 = vpop.permute.xlu0 %1923
        %1926 = vset.pattern.permute.xlu0 3
        %1927 = vperm.xlu0 %1926, %v1458
        %v1928 = vpop.permute.xlu0 %1927
        %1930 = vset.pattern.permute.xlu0 3
        %1931 = vperm.xlu0 %1930, %v1473
        %v1932 = vpop.permute.xlu0 %1931
        %1934 = vset.pattern.permute.xlu0 3
        %1935 = vperm.xlu0 %1934, %v1488
        %v1936 = vpop.permute.xlu0 %1935
        %1938 = vset.pattern.permute.xlu0 3
        %1939 = vperm.xlu0 %1938, %v1503
        %v1940 = vpop.permute.xlu0 %1939
        %1942 = vset.pattern.permute.xlu0 3
        %1943 = vperm.xlu0 %1942, %v1518
        %v1944 = vpop.permute.xlu0 %1943
        %1946 = vset.pattern.permute.xlu0 3
        %1947 = vperm.xlu0 %1946, %v1533
        %v1948 = vpop.permute.xlu0 %1947
        %v1950 = vperm.slane %v357, 3
        %v1951 = vperm.slane %v358, 3
        %v1952 = vperm.slane %v359, 3
        %v1953 = vperm.slane %v360, 3
        %v1954 = vperm.slane %v361, 3
        %v1955 = vperm.slane %v362, 3
        %v1956 = vperm.slane %v363, 3
        %v1957 = vperm.slane %v364, 3
        %v1958 = vperm.slane %v365, 3
        %v1959 = vperm.slane %v366, 3
        %v1960 = vperm.slane %v367, 3
        %v1961 = vperm.slane %v368, 3
        %v1962 = vperm.slane %v369, 3
        %v1963 = vperm.slane %v370, 3
        %v1964 = vperm.slane %v371, 3
        %v1965 = vperm.slane %v372, 3
        %v1966 = vmul.f32 %v1888, %v1950
        %v1967 = vmul.f32 %v1892, %v1951
        %v1968 = vmul.f32 %v1896, %v1952
        %v1969 = vmul.f32 %v1900, %v1953
        %v1970 = vmul.f32 %v1904, %v1954
        %v1971 = vmul.f32 %v1908, %v1955
        %v1972 = vmul.f32 %v1912, %v1956
        %v1973 = vmul.f32 %v1916, %v1957
        %v1974 = vmul.f32 %v1920, %v1958
        %v1975 = vmul.f32 %v1924, %v1959
        %v1976 = vmul.f32 %v1928, %v1960
        %v1977 = vmul.f32 %v1932, %v1961
        %v1978 = vmul.f32 %v1936, %v1962
        %v1979 = vmul.f32 %v1940, %v1963
        %v1980 = vmul.f32 %v1944, %v1964
        %v1981 = vmul.f32 %v1948, %v1965
        %v1982 = vadd.f32 %v1870, %v1966
        %v1983 = vadd.f32 %v1871, %v1967
        %v1984 = vadd.f32 %v1872, %v1968
        %v1985 = vadd.f32 %v1873, %v1969
        %v1986 = vadd.f32 %v1874, %v1970
        %v1987 = vadd.f32 %v1875, %v1971
        %v1988 = vadd.f32 %v1876, %v1972
        %v1989 = vadd.f32 %v1877, %v1973
        %v1990 = vadd.f32 %v1878, %v1974
        %v1991 = vadd.f32 %v1879, %v1975
        %v1992 = vadd.f32 %v1880, %v1976
        %v1993 = vadd.f32 %v1881, %v1977
        %v1994 = vadd.f32 %v1882, %v1978
        %v1995 = vadd.f32 %v1883, %v1979
        %v1996 = vadd.f32 %v1884, %v1980
        %v1997 = vadd.f32 %v1885, %v1981
        %1998 = vset.pattern.permute.xlu0 4
        %1999 = vperm.xlu0 %1998, %v1308
        %v2000 = vpop.permute.xlu0 %1999
        %2002 = vset.pattern.permute.xlu0 4
        %2003 = vperm.xlu0 %2002, %v1323
        %v2004 = vpop.permute.xlu0 %2003
        %2006 = vset.pattern.permute.xlu0 4
        %2007 = vperm.xlu0 %2006, %v1338
        %v2008 = vpop.permute.xlu0 %2007
        %2010 = vset.pattern.permute.xlu0 4
        %2011 = vperm.xlu0 %2010, %v1353
        %v2012 = vpop.permute.xlu0 %2011
        %2014 = vset.pattern.permute.xlu0 4
        %2015 = vperm.xlu0 %2014, %v1368
        %v2016 = vpop.permute.xlu0 %2015
        %2018 = vset.pattern.permute.xlu0 4
        %2019 = vperm.xlu0 %2018, %v1383
        %v2020 = vpop.permute.xlu0 %2019
        %2022 = vset.pattern.permute.xlu0 4
        %2023 = vperm.xlu0 %2022, %v1398
        %v2024 = vpop.permute.xlu0 %2023
        %2026 = vset.pattern.permute.xlu0 4
        %2027 = vperm.xlu0 %2026, %v1413
        %v2028 = vpop.permute.xlu0 %2027
        %2030 = vset.pattern.permute.xlu0 4
        %2031 = vperm.xlu0 %2030, %v1428
        %v2032 = vpop.permute.xlu0 %2031
        %2034 = vset.pattern.permute.xlu0 4
        %2035 = vperm.xlu0 %2034, %v1443
        %v2036 = vpop.permute.xlu0 %2035
        %2038 = vset.pattern.permute.xlu0 4
        %2039 = vperm.xlu0 %2038, %v1458
        %v2040 = vpop.permute.xlu0 %2039
        %2042 = vset.pattern.permute.xlu0 4
        %2043 = vperm.xlu0 %2042, %v1473
        %v2044 = vpop.permute.xlu0 %2043
        %2046 = vset.pattern.permute.xlu0 4
        %2047 = vperm.xlu0 %2046, %v1488
        %v2048 = vpop.permute.xlu0 %2047
        %2050 = vset.pattern.permute.xlu0 4
        %2051 = vperm.xlu0 %2050, %v1503
        %v2052 = vpop.permute.xlu0 %2051
        %2054 = vset.pattern.permute.xlu0 4
        %2055 = vperm.xlu0 %2054, %v1518
        %v2056 = vpop.permute.xlu0 %2055
        %2058 = vset.pattern.permute.xlu0 4
        %2059 = vperm.xlu0 %2058, %v1533
        %v2060 = vpop.permute.xlu0 %2059
        %v2062 = vperm.slane %v357, 4
        %v2063 = vperm.slane %v358, 4
        %v2064 = vperm.slane %v359, 4
        %v2065 = vperm.slane %v360, 4
        %v2066 = vperm.slane %v361, 4
        %v2067 = vperm.slane %v362, 4
        %v2068 = vperm.slane %v363, 4
        %v2069 = vperm.slane %v364, 4
        %v2070 = vperm.slane %v365, 4
        %v2071 = vperm.slane %v366, 4
        %v2072 = vperm.slane %v367, 4
        %v2073 = vperm.slane %v368, 4
        %v2074 = vperm.slane %v369, 4
        %v2075 = vperm.slane %v370, 4
        %v2076 = vperm.slane %v371, 4
        %v2077 = vperm.slane %v372, 4
        %v2078 = vmul.f32 %v2000, %v2062
        %v2079 = vmul.f32 %v2004, %v2063
        %v2080 = vmul.f32 %v2008, %v2064
        %v2081 = vmul.f32 %v2012, %v2065
        %v2082 = vmul.f32 %v2016, %v2066
        %v2083 = vmul.f32 %v2020, %v2067
        %v2084 = vmul.f32 %v2024, %v2068
        %v2085 = vmul.f32 %v2028, %v2069
        %v2086 = vmul.f32 %v2032, %v2070
        %v2087 = vmul.f32 %v2036, %v2071
        %v2088 = vmul.f32 %v2040, %v2072
        %v2089 = vmul.f32 %v2044, %v2073
        %v2090 = vmul.f32 %v2048, %v2074
        %v2091 = vmul.f32 %v2052, %v2075
        %v2092 = vmul.f32 %v2056, %v2076
        %v2093 = vmul.f32 %v2060, %v2077
        %v2094 = vadd.f32 %v1982, %v2078
        %v2095 = vadd.f32 %v1983, %v2079
        %v2096 = vadd.f32 %v1984, %v2080
        %v2097 = vadd.f32 %v1985, %v2081
        %v2098 = vadd.f32 %v1986, %v2082
        %v2099 = vadd.f32 %v1987, %v2083
        %v2100 = vadd.f32 %v1988, %v2084
        %v2101 = vadd.f32 %v1989, %v2085
        %v2102 = vadd.f32 %v1990, %v2086
        %v2103 = vadd.f32 %v1991, %v2087
        %v2104 = vadd.f32 %v1992, %v2088
        %v2105 = vadd.f32 %v1993, %v2089
        %v2106 = vadd.f32 %v1994, %v2090
        %v2107 = vadd.f32 %v1995, %v2091
        %v2108 = vadd.f32 %v1996, %v2092
        %v2109 = vadd.f32 %v1997, %v2093
        %2110 = vset.pattern.permute.xlu0 5
        %2111 = vperm.xlu0 %2110, %v1308
        %v2112 = vpop.permute.xlu0 %2111
        %2114 = vset.pattern.permute.xlu0 5
        %2115 = vperm.xlu0 %2114, %v1323
        %v2116 = vpop.permute.xlu0 %2115
        %2118 = vset.pattern.permute.xlu0 5
        %2119 = vperm.xlu0 %2118, %v1338
        %v2120 = vpop.permute.xlu0 %2119
        %2122 = vset.pattern.permute.xlu0 5
        %2123 = vperm.xlu0 %2122, %v1353
        %v2124 = vpop.permute.xlu0 %2123
        %2126 = vset.pattern.permute.xlu0 5
        %2127 = vperm.xlu0 %2126, %v1368
        %v2128 = vpop.permute.xlu0 %2127
        %2130 = vset.pattern.permute.xlu0 5
        %2131 = vperm.xlu0 %2130, %v1383
        %v2132 = vpop.permute.xlu0 %2131
        %2134 = vset.pattern.permute.xlu0 5
        %2135 = vperm.xlu0 %2134, %v1398
        %v2136 = vpop.permute.xlu0 %2135
        %2138 = vset.pattern.permute.xlu0 5
        %2139 = vperm.xlu0 %2138, %v1413
        %v2140 = vpop.permute.xlu0 %2139
        %2142 = vset.pattern.permute.xlu0 5
        %2143 = vperm.xlu0 %2142, %v1428
        %v2144 = vpop.permute.xlu0 %2143
        %2146 = vset.pattern.permute.xlu0 5
        %2147 = vperm.xlu0 %2146, %v1443
        %v2148 = vpop.permute.xlu0 %2147
        %2150 = vset.pattern.permute.xlu0 5
        %2151 = vperm.xlu0 %2150, %v1458
        %v2152 = vpop.permute.xlu0 %2151
        %2154 = vset.pattern.permute.xlu0 5
        %2155 = vperm.xlu0 %2154, %v1473
        %v2156 = vpop.permute.xlu0 %2155
        %2158 = vset.pattern.permute.xlu0 5
        %2159 = vperm.xlu0 %2158, %v1488
        %v2160 = vpop.permute.xlu0 %2159
        %2162 = vset.pattern.permute.xlu0 5
        %2163 = vperm.xlu0 %2162, %v1503
        %v2164 = vpop.permute.xlu0 %2163
        %2166 = vset.pattern.permute.xlu0 5
        %2167 = vperm.xlu0 %2166, %v1518
        %v2168 = vpop.permute.xlu0 %2167
        %2170 = vset.pattern.permute.xlu0 5
        %2171 = vperm.xlu0 %2170, %v1533
        %v2172 = vpop.permute.xlu0 %2171
        %v2174 = vperm.slane %v357, 5
        %v2175 = vperm.slane %v358, 5
        %v2176 = vperm.slane %v359, 5
        %v2177 = vperm.slane %v360, 5
        %v2178 = vperm.slane %v361, 5
        %v2179 = vperm.slane %v362, 5
        %v2180 = vperm.slane %v363, 5
        %v2181 = vperm.slane %v364, 5
        %v2182 = vperm.slane %v365, 5
        %v2183 = vperm.slane %v366, 5
        %v2184 = vperm.slane %v367, 5
        %v2185 = vperm.slane %v368, 5
        %v2186 = vperm.slane %v369, 5
        %v2187 = vperm.slane %v370, 5
        %v2188 = vperm.slane %v371, 5
        %v2189 = vperm.slane %v372, 5
        %v2190 = vmul.f32 %v2112, %v2174
        %v2191 = vmul.f32 %v2116, %v2175
        %v2192 = vmul.f32 %v2120, %v2176
        %v2193 = vmul.f32 %v2124, %v2177
        %v2194 = vmul.f32 %v2128, %v2178
        %v2195 = vmul.f32 %v2132, %v2179
        %v2196 = vmul.f32 %v2136, %v2180
        %v2197 = vmul.f32 %v2140, %v2181
        %v2198 = vmul.f32 %v2144, %v2182
        %v2199 = vmul.f32 %v2148, %v2183
        %v2200 = vmul.f32 %v2152, %v2184
        %v2201 = vmul.f32 %v2156, %v2185
        %v2202 = vmul.f32 %v2160, %v2186
        %v2203 = vmul.f32 %v2164, %v2187
        %v2204 = vmul.f32 %v2168, %v2188
        %v2205 = vmul.f32 %v2172, %v2189
        %v2206 = vadd.f32 %v2094, %v2190
        %v2207 = vadd.f32 %v2095, %v2191
        %v2208 = vadd.f32 %v2096, %v2192
        %v2209 = vadd.f32 %v2097, %v2193
        %v2210 = vadd.f32 %v2098, %v2194
        %v2211 = vadd.f32 %v2099, %v2195
        %v2212 = vadd.f32 %v2100, %v2196
        %v2213 = vadd.f32 %v2101, %v2197
        %v2214 = vadd.f32 %v2102, %v2198
        %v2215 = vadd.f32 %v2103, %v2199
        %v2216 = vadd.f32 %v2104, %v2200
        %v2217 = vadd.f32 %v2105, %v2201
        %v2218 = vadd.f32 %v2106, %v2202
        %v2219 = vadd.f32 %v2107, %v2203
        %v2220 = vadd.f32 %v2108, %v2204
        %v2221 = vadd.f32 %v2109, %v2205
        %2222 = vset.pattern.permute.xlu0 6
        %2223 = vperm.xlu0 %2222, %v1308
        %v2224 = vpop.permute.xlu0 %2223
        %2226 = vset.pattern.permute.xlu0 6
        %2227 = vperm.xlu0 %2226, %v1323
        %v2228 = vpop.permute.xlu0 %2227
        %2230 = vset.pattern.permute.xlu0 6
        %2231 = vperm.xlu0 %2230, %v1338
        %v2232 = vpop.permute.xlu0 %2231
        %2234 = vset.pattern.permute.xlu0 6
        %2235 = vperm.xlu0 %2234, %v1353
        %v2236 = vpop.permute.xlu0 %2235
        %2238 = vset.pattern.permute.xlu0 6
        %2239 = vperm.xlu0 %2238, %v1368
        %v2240 = vpop.permute.xlu0 %2239
        %2242 = vset.pattern.permute.xlu0 6
        %2243 = vperm.xlu0 %2242, %v1383
        %v2244 = vpop.permute.xlu0 %2243
        %2246 = vset.pattern.permute.xlu0 6
        %2247 = vperm.xlu0 %2246, %v1398
        %v2248 = vpop.permute.xlu0 %2247
        %2250 = vset.pattern.permute.xlu0 6
        %2251 = vperm.xlu0 %2250, %v1413
        %v2252 = vpop.permute.xlu0 %2251
        %2254 = vset.pattern.permute.xlu0 6
        %2255 = vperm.xlu0 %2254, %v1428
        %v2256 = vpop.permute.xlu0 %2255
        %2258 = vset.pattern.permute.xlu0 6
        %2259 = vperm.xlu0 %2258, %v1443
        %v2260 = vpop.permute.xlu0 %2259
        %2262 = vset.pattern.permute.xlu0 6
        %2263 = vperm.xlu0 %2262, %v1458
        %v2264 = vpop.permute.xlu0 %2263
        %2266 = vset.pattern.permute.xlu0 6
        %2267 = vperm.xlu0 %2266, %v1473
        %v2268 = vpop.permute.xlu0 %2267
        %2270 = vset.pattern.permute.xlu0 6
        %2271 = vperm.xlu0 %2270, %v1488
        %v2272 = vpop.permute.xlu0 %2271
        %2274 = vset.pattern.permute.xlu0 6
        %2275 = vperm.xlu0 %2274, %v1503
        %v2276 = vpop.permute.xlu0 %2275
        %2278 = vset.pattern.permute.xlu0 6
        %2279 = vperm.xlu0 %2278, %v1518
        %v2280 = vpop.permute.xlu0 %2279
        %2282 = vset.pattern.permute.xlu0 6
        %2283 = vperm.xlu0 %2282, %v1533
        %v2284 = vpop.permute.xlu0 %2283
        %v2286 = vperm.slane %v357, 6
        %v2287 = vperm.slane %v358, 6
        %v2288 = vperm.slane %v359, 6
        %v2289 = vperm.slane %v360, 6
        %v2290 = vperm.slane %v361, 6
        %v2291 = vperm.slane %v362, 6
        %v2292 = vperm.slane %v363, 6
        %v2293 = vperm.slane %v364, 6
        %v2294 = vperm.slane %v365, 6
        %v2295 = vperm.slane %v366, 6
        %v2296 = vperm.slane %v367, 6
        %v2297 = vperm.slane %v368, 6
        %v2298 = vperm.slane %v369, 6
        %v2299 = vperm.slane %v370, 6
        %v2300 = vperm.slane %v371, 6
        %v2301 = vperm.slane %v372, 6
        %v2302 = vmul.f32 %v2224, %v2286
        %v2303 = vmul.f32 %v2228, %v2287
        %v2304 = vmul.f32 %v2232, %v2288
        %v2305 = vmul.f32 %v2236, %v2289
        %v2306 = vmul.f32 %v2240, %v2290
        %v2307 = vmul.f32 %v2244, %v2291
        %v2308 = vmul.f32 %v2248, %v2292
        %v2309 = vmul.f32 %v2252, %v2293
        %v2310 = vmul.f32 %v2256, %v2294
        %v2311 = vmul.f32 %v2260, %v2295
        %v2312 = vmul.f32 %v2264, %v2296
        %v2313 = vmul.f32 %v2268, %v2297
        %v2314 = vmul.f32 %v2272, %v2298
        %v2315 = vmul.f32 %v2276, %v2299
        %v2316 = vmul.f32 %v2280, %v2300
        %v2317 = vmul.f32 %v2284, %v2301
        %v2318 = vadd.f32 %v2206, %v2302
        %v2319 = vadd.f32 %v2207, %v2303
        %v2320 = vadd.f32 %v2208, %v2304
        %v2321 = vadd.f32 %v2209, %v2305
        %v2322 = vadd.f32 %v2210, %v2306
        %v2323 = vadd.f32 %v2211, %v2307
        %v2324 = vadd.f32 %v2212, %v2308
        %v2325 = vadd.f32 %v2213, %v2309
        %v2326 = vadd.f32 %v2214, %v2310
        %v2327 = vadd.f32 %v2215, %v2311
        %v2328 = vadd.f32 %v2216, %v2312
        %v2329 = vadd.f32 %v2217, %v2313
        %v2330 = vadd.f32 %v2218, %v2314
        %v2331 = vadd.f32 %v2219, %v2315
        %v2332 = vadd.f32 %v2220, %v2316
        %v2333 = vadd.f32 %v2221, %v2317
        %2334 = vset.pattern.permute.xlu0 7
        %2335 = vperm.xlu0 %2334, %v1308
        %v2336 = vpop.permute.xlu0 %2335
        %2338 = vset.pattern.permute.xlu0 7
        %2339 = vperm.xlu0 %2338, %v1323
        %v2340 = vpop.permute.xlu0 %2339
        %2342 = vset.pattern.permute.xlu0 7
        %2343 = vperm.xlu0 %2342, %v1338
        %v2344 = vpop.permute.xlu0 %2343
        %2346 = vset.pattern.permute.xlu0 7
        %2347 = vperm.xlu0 %2346, %v1353
        %v2348 = vpop.permute.xlu0 %2347
        %2350 = vset.pattern.permute.xlu0 7
        %2351 = vperm.xlu0 %2350, %v1368
        %v2352 = vpop.permute.xlu0 %2351
        %2354 = vset.pattern.permute.xlu0 7
        %2355 = vperm.xlu0 %2354, %v1383
        %v2356 = vpop.permute.xlu0 %2355
        %2358 = vset.pattern.permute.xlu0 7
        %2359 = vperm.xlu0 %2358, %v1398
        %v2360 = vpop.permute.xlu0 %2359
        %2362 = vset.pattern.permute.xlu0 7
        %2363 = vperm.xlu0 %2362, %v1413
        %v2364 = vpop.permute.xlu0 %2363
        %2366 = vset.pattern.permute.xlu0 7
        %2367 = vperm.xlu0 %2366, %v1428
        %v2368 = vpop.permute.xlu0 %2367
        %2370 = vset.pattern.permute.xlu0 7
        %2371 = vperm.xlu0 %2370, %v1443
        %v2372 = vpop.permute.xlu0 %2371
        %2374 = vset.pattern.permute.xlu0 7
        %2375 = vperm.xlu0 %2374, %v1458
        %v2376 = vpop.permute.xlu0 %2375
        %2378 = vset.pattern.permute.xlu0 7
        %2379 = vperm.xlu0 %2378, %v1473
        %v2380 = vpop.permute.xlu0 %2379
        %2382 = vset.pattern.permute.xlu0 7
        %2383 = vperm.xlu0 %2382, %v1488
        %v2384 = vpop.permute.xlu0 %2383
        %2386 = vset.pattern.permute.xlu0 7
        %2387 = vperm.xlu0 %2386, %v1503
        %v2388 = vpop.permute.xlu0 %2387
        %2390 = vset.pattern.permute.xlu0 7
        %2391 = vperm.xlu0 %2390, %v1518
        %v2392 = vpop.permute.xlu0 %2391
        %2394 = vset.pattern.permute.xlu0 7
        %2395 = vperm.xlu0 %2394, %v1533
        %v2396 = vpop.permute.xlu0 %2395
        %v2398 = vperm.slane %v357, 7
        %v2399 = vperm.slane %v358, 7
        %v2400 = vperm.slane %v359, 7
        %v2401 = vperm.slane %v360, 7
        %v2402 = vperm.slane %v361, 7
        %v2403 = vperm.slane %v362, 7
        %v2404 = vperm.slane %v363, 7
        %v2405 = vperm.slane %v364, 7
        %v2406 = vperm.slane %v365, 7
        %v2407 = vperm.slane %v366, 7
        %v2408 = vperm.slane %v367, 7
        %v2409 = vperm.slane %v368, 7
        %v2410 = vperm.slane %v369, 7
        %v2411 = vperm.slane %v370, 7
        %v2412 = vperm.slane %v371, 7
        %v2413 = vperm.slane %v372, 7
        %v2414 = vmul.f32 %v2336, %v2398
        %v2415 = vmul.f32 %v2340, %v2399
        %v2416 = vmul.f32 %v2344, %v2400
        %v2417 = vmul.f32 %v2348, %v2401
        %v2418 = vmul.f32 %v2352, %v2402
        %v2419 = vmul.f32 %v2356, %v2403
        %v2420 = vmul.f32 %v2360, %v2404
        %v2421 = vmul.f32 %v2364, %v2405
        %v2422 = vmul.f32 %v2368, %v2406
        %v2423 = vmul.f32 %v2372, %v2407
        %v2424 = vmul.f32 %v2376, %v2408
        %v2425 = vmul.f32 %v2380, %v2409
        %v2426 = vmul.f32 %v2384, %v2410
        %v2427 = vmul.f32 %v2388, %v2411
        %v2428 = vmul.f32 %v2392, %v2412
        %v2429 = vmul.f32 %v2396, %v2413
        %v2430 = vadd.f32 %v2318, %v2414
        %v2431 = vadd.f32 %v2319, %v2415
        %v2432 = vadd.f32 %v2320, %v2416
        %v2433 = vadd.f32 %v2321, %v2417
        %v2434 = vadd.f32 %v2322, %v2418
        %v2435 = vadd.f32 %v2323, %v2419
        %v2436 = vadd.f32 %v2324, %v2420
        %v2437 = vadd.f32 %v2325, %v2421
        %v2438 = vadd.f32 %v2326, %v2422
        %v2439 = vadd.f32 %v2327, %v2423
        %v2440 = vadd.f32 %v2328, %v2424
        %v2441 = vadd.f32 %v2329, %v2425
        %v2442 = vadd.f32 %v2330, %v2426
        %v2443 = vadd.f32 %v2331, %v2427
        %v2444 = vadd.f32 %v2332, %v2428
        %v2445 = vadd.f32 %v2333, %v2429
        %v2462 = vrot.slane %v2430, 1
        %v2463 = vrot.slane %v2431, 1
        %v2464 = vrot.slane %v2432, 1
        %v2465 = vrot.slane %v2433, 1
        %v2466 = vrot.slane %v2434, 1
        %v2467 = vrot.slane %v2435, 1
        %v2468 = vrot.slane %v2436, 1
        %v2469 = vrot.slane %v2437, 1
        %v2470 = vrot.slane %v2438, 1
        %v2471 = vrot.slane %v2439, 1
        %v2472 = vrot.slane %v2440, 1
        %v2473 = vrot.slane %v2441, 1
        %v2474 = vrot.slane %v2442, 1
        %v2475 = vrot.slane %v2443, 1
        %v2476 = vrot.slane %v2444, 1
        %v2477 = vrot.slane %v2445, 1
        %2478 = vrot.lane.b32.xlu0 %v2462, 16
        %v2479 = vpop.permute.xlu0 %2478
        %2480 = vrot.lane.b32.xlu0 %v2463, 16
        %v2481 = vpop.permute.xlu0 %2480
        %2482 = vrot.lane.b32.xlu0 %v2464, 16
        %v2483 = vpop.permute.xlu0 %2482
        %2484 = vrot.lane.b32.xlu0 %v2465, 16
        %v2485 = vpop.permute.xlu0 %2484
        %2486 = vrot.lane.b32.xlu0 %v2466, 16
        %v2487 = vpop.permute.xlu0 %2486
        %2488 = vrot.lane.b32.xlu0 %v2467, 16
        %v2489 = vpop.permute.xlu0 %2488
        %2490 = vrot.lane.b32.xlu0 %v2468, 16
        %v2491 = vpop.permute.xlu0 %2490
        %2492 = vrot.lane.b32.xlu0 %v2469, 16
        %v2493 = vpop.permute.xlu0 %2492
        %2494 = vrot.lane.b32.xlu0 %v2470, 16
        %v2495 = vpop.permute.xlu0 %2494
        %2496 = vrot.lane.b32.xlu0 %v2471, 16
        %v2497 = vpop.permute.xlu0 %2496
        %2498 = vrot.lane.b32.xlu0 %v2472, 16
        %v2499 = vpop.permute.xlu0 %2498
        %2500 = vrot.lane.b32.xlu0 %v2473, 16
        %v2501 = vpop.permute.xlu0 %2500
        %2502 = vrot.lane.b32.xlu0 %v2474, 16
        %v2503 = vpop.permute.xlu0 %2502
        %2504 = vrot.lane.b32.xlu0 %v2475, 16
        %v2505 = vpop.permute.xlu0 %2504
        %2506 = vrot.lane.b32.xlu0 %v2476, 16
        %v2507 = vpop.permute.xlu0 %2506
        %2508 = vrot.lane.b32.xlu0 %v2477, 16
        %v2509 = vpop.permute.xlu0 %2508
        %v2526 = vrot.slane %v2430, 2
        %v2527 = vrot.slane %v2431, 2
        %v2528 = vrot.slane %v2432, 2
        %v2529 = vrot.slane %v2433, 2
        %v2530 = vrot.slane %v2434, 2
        %v2531 = vrot.slane %v2435, 2
        %v2532 = vrot.slane %v2436, 2
        %v2533 = vrot.slane %v2437, 2
        %v2534 = vrot.slane %v2438, 2
        %v2535 = vrot.slane %v2439, 2
        %v2536 = vrot.slane %v2440, 2
        %v2537 = vrot.slane %v2441, 2
        %v2538 = vrot.slane %v2442, 2
        %v2539 = vrot.slane %v2443, 2
        %v2540 = vrot.slane %v2444, 2
        %v2541 = vrot.slane %v2445, 2
        %2542 = vrot.lane.b32.xlu0 %v2526, 32
        %v2543 = vpop.permute.xlu0 %2542
        %2544 = vrot.lane.b32.xlu0 %v2527, 32
        %v2545 = vpop.permute.xlu0 %2544
        %2546 = vrot.lane.b32.xlu0 %v2528, 32
        %v2547 = vpop.permute.xlu0 %2546
        %2548 = vrot.lane.b32.xlu0 %v2529, 32
        %v2549 = vpop.permute.xlu0 %2548
        %2550 = vrot.lane.b32.xlu0 %v2530, 32
        %v2551 = vpop.permute.xlu0 %2550
        %2552 = vrot.lane.b32.xlu0 %v2531, 32
        %v2553 = vpop.permute.xlu0 %2552
        %2554 = vrot.lane.b32.xlu0 %v2532, 32
        %v2555 = vpop.permute.xlu0 %2554
        %2556 = vrot.lane.b32.xlu0 %v2533, 32
        %v2557 = vpop.permute.xlu0 %2556
        %2558 = vrot.lane.b32.xlu0 %v2534, 32
        %v2559 = vpop.permute.xlu0 %2558
        %2560 = vrot.lane.b32.xlu0 %v2535, 32
        %v2561 = vpop.permute.xlu0 %2560
        %2562 = vrot.lane.b32.xlu0 %v2536, 32
        %v2563 = vpop.permute.xlu0 %2562
        %2564 = vrot.lane.b32.xlu0 %v2537, 32
        %v2565 = vpop.permute.xlu0 %2564
        %2566 = vrot.lane.b32.xlu0 %v2538, 32
        %v2567 = vpop.permute.xlu0 %2566
        %2568 = vrot.lane.b32.xlu0 %v2539, 32
        %v2569 = vpop.permute.xlu0 %2568
        %2570 = vrot.lane.b32.xlu0 %v2540, 32
        %v2571 = vpop.permute.xlu0 %2570
        %2572 = vrot.lane.b32.xlu0 %v2541, 32
        %v2573 = vpop.permute.xlu0 %2572
        %v2590 = vrot.slane %v2430, 3
        %v2591 = vrot.slane %v2431, 3
        %v2592 = vrot.slane %v2432, 3
        %v2593 = vrot.slane %v2433, 3
        %v2594 = vrot.slane %v2434, 3
        %v2595 = vrot.slane %v2435, 3
        %v2596 = vrot.slane %v2436, 3
        %v2597 = vrot.slane %v2437, 3
        %v2598 = vrot.slane %v2438, 3
        %v2599 = vrot.slane %v2439, 3
        %v2600 = vrot.slane %v2440, 3
        %v2601 = vrot.slane %v2441, 3
        %v2602 = vrot.slane %v2442, 3
        %v2603 = vrot.slane %v2443, 3
        %v2604 = vrot.slane %v2444, 3
        %v2605 = vrot.slane %v2445, 3
        %2606 = vrot.lane.b32.xlu0 %v2590, 48
        %v2607 = vpop.permute.xlu0 %2606
        %2608 = vrot.lane.b32.xlu0 %v2591, 48
        %v2609 = vpop.permute.xlu0 %2608
        %2610 = vrot.lane.b32.xlu0 %v2592, 48
        %v2611 = vpop.permute.xlu0 %2610
        %2612 = vrot.lane.b32.xlu0 %v2593, 48
        %v2613 = vpop.permute.xlu0 %2612
        %2614 = vrot.lane.b32.xlu0 %v2594, 48
        %v2615 = vpop.permute.xlu0 %2614
        %2616 = vrot.lane.b32.xlu0 %v2595, 48
        %v2617 = vpop.permute.xlu0 %2616
        %2618 = vrot.lane.b32.xlu0 %v2596, 48
        %v2619 = vpop.permute.xlu0 %2618
        %2620 = vrot.lane.b32.xlu0 %v2597, 48
        %v2621 = vpop.permute.xlu0 %2620
        %2622 = vrot.lane.b32.xlu0 %v2598, 48
        %v2623 = vpop.permute.xlu0 %2622
        %2624 = vrot.lane.b32.xlu0 %v2599, 48
        %v2625 = vpop.permute.xlu0 %2624
        %2626 = vrot.lane.b32.xlu0 %v2600, 48
        %v2627 = vpop.permute.xlu0 %2626
        %2628 = vrot.lane.b32.xlu0 %v2601, 48
        %v2629 = vpop.permute.xlu0 %2628
        %2630 = vrot.lane.b32.xlu0 %v2602, 48
        %v2631 = vpop.permute.xlu0 %2630
        %2632 = vrot.lane.b32.xlu0 %v2603, 48
        %v2633 = vpop.permute.xlu0 %2632
        %2634 = vrot.lane.b32.xlu0 %v2604, 48
        %v2635 = vpop.permute.xlu0 %2634
        %2636 = vrot.lane.b32.xlu0 %v2605, 48
        %v2637 = vpop.permute.xlu0 %2636
        %v2654 = vrot.slane %v2430, 4
        %v2655 = vrot.slane %v2431, 4
        %v2656 = vrot.slane %v2432, 4
        %v2657 = vrot.slane %v2433, 4
        %v2658 = vrot.slane %v2434, 4
        %v2659 = vrot.slane %v2435, 4
        %v2660 = vrot.slane %v2436, 4
        %v2661 = vrot.slane %v2437, 4
        %v2662 = vrot.slane %v2438, 4
        %v2663 = vrot.slane %v2439, 4
        %v2664 = vrot.slane %v2440, 4
        %v2665 = vrot.slane %v2441, 4
        %v2666 = vrot.slane %v2442, 4
        %v2667 = vrot.slane %v2443, 4
        %v2668 = vrot.slane %v2444, 4
        %v2669 = vrot.slane %v2445, 4
        %2670 = vrot.lane.b32.xlu0 %v2654, 64
        %v2671 = vpop.permute.xlu0 %2670
        %2672 = vrot.lane.b32.xlu0 %v2655, 64
        %v2673 = vpop.permute.xlu0 %2672
        %2674 = vrot.lane.b32.xlu0 %v2656, 64
        %v2675 = vpop.permute.xlu0 %2674
        %2676 = vrot.lane.b32.xlu0 %v2657, 64
        %v2677 = vpop.permute.xlu0 %2676
        %2678 = vrot.lane.b32.xlu0 %v2658, 64
        %v2679 = vpop.permute.xlu0 %2678
        %2680 = vrot.lane.b32.xlu0 %v2659, 64
        %v2681 = vpop.permute.xlu0 %2680
        %2682 = vrot.lane.b32.xlu0 %v2660, 64
        %v2683 = vpop.permute.xlu0 %2682
        %2684 = vrot.lane.b32.xlu0 %v2661, 64
        %v2685 = vpop.permute.xlu0 %2684
        %2686 = vrot.lane.b32.xlu0 %v2662, 64
        %v2687 = vpop.permute.xlu0 %2686
        %2688 = vrot.lane.b32.xlu0 %v2663, 64
        %v2689 = vpop.permute.xlu0 %2688
        %2690 = vrot.lane.b32.xlu0 %v2664, 64
        %v2691 = vpop.permute.xlu0 %2690
        %2692 = vrot.lane.b32.xlu0 %v2665, 64
        %v2693 = vpop.permute.xlu0 %2692
        %2694 = vrot.lane.b32.xlu0 %v2666, 64
        %v2695 = vpop.permute.xlu0 %2694
        %2696 = vrot.lane.b32.xlu0 %v2667, 64
        %v2697 = vpop.permute.xlu0 %2696
        %2698 = vrot.lane.b32.xlu0 %v2668, 64
        %v2699 = vpop.permute.xlu0 %2698
        %2700 = vrot.lane.b32.xlu0 %v2669, 64
        %v2701 = vpop.permute.xlu0 %2700
        %v2718 = vrot.slane %v2430, 5
        %v2719 = vrot.slane %v2431, 5
        %v2720 = vrot.slane %v2432, 5
        %v2721 = vrot.slane %v2433, 5
        %v2722 = vrot.slane %v2434, 5
        %v2723 = vrot.slane %v2435, 5
        %v2724 = vrot.slane %v2436, 5
        %v2725 = vrot.slane %v2437, 5
        %v2726 = vrot.slane %v2438, 5
        %v2727 = vrot.slane %v2439, 5
        %v2728 = vrot.slane %v2440, 5
        %v2729 = vrot.slane %v2441, 5
        %v2730 = vrot.slane %v2442, 5
        %v2731 = vrot.slane %v2443, 5
        %v2732 = vrot.slane %v2444, 5
        %v2733 = vrot.slane %v2445, 5
        %2734 = vrot.lane.b32.xlu0 %v2718, 80
        %v2735 = vpop.permute.xlu0 %2734
        %2736 = vrot.lane.b32.xlu0 %v2719, 80
        %v2737 = vpop.permute.xlu0 %2736
        %2738 = vrot.lane.b32.xlu0 %v2720, 80
        %v2739 = vpop.permute.xlu0 %2738
        %2740 = vrot.lane.b32.xlu0 %v2721, 80
        %v2741 = vpop.permute.xlu0 %2740
        %2742 = vrot.lane.b32.xlu0 %v2722, 80
        %v2743 = vpop.permute.xlu0 %2742
        %2744 = vrot.lane.b32.xlu0 %v2723, 80
        %v2745 = vpop.permute.xlu0 %2744
        %2746 = vrot.lane.b32.xlu0 %v2724, 80
        %v2747 = vpop.permute.xlu0 %2746
        %2748 = vrot.lane.b32.xlu0 %v2725, 80
        %v2749 = vpop.permute.xlu0 %2748
        %2750 = vrot.lane.b32.xlu0 %v2726, 80
        %v2751 = vpop.permute.xlu0 %2750
        %2752 = vrot.lane.b32.xlu0 %v2727, 80
        %v2753 = vpop.permute.xlu0 %2752
        %2754 = vrot.lane.b32.xlu0 %v2728, 80
        %v2755 = vpop.permute.xlu0 %2754
        %2756 = vrot.lane.b32.xlu0 %v2729, 80
        %v2757 = vpop.permute.xlu0 %2756
        %2758 = vrot.lane.b32.xlu0 %v2730, 80
        %v2759 = vpop.permute.xlu0 %2758
        %2760 = vrot.lane.b32.xlu0 %v2731, 80
        %v2761 = vpop.permute.xlu0 %2760
        %2762 = vrot.lane.b32.xlu0 %v2732, 80
        %v2763 = vpop.permute.xlu0 %2762
        %2764 = vrot.lane.b32.xlu0 %v2733, 80
        %v2765 = vpop.permute.xlu0 %2764
        %v2782 = vrot.slane %v2430, 6
        %v2783 = vrot.slane %v2431, 6
        %v2784 = vrot.slane %v2432, 6
        %v2785 = vrot.slane %v2433, 6
        %v2786 = vrot.slane %v2434, 6
        %v2787 = vrot.slane %v2435, 6
        %v2788 = vrot.slane %v2436, 6
        %v2789 = vrot.slane %v2437, 6
        %v2790 = vrot.slane %v2438, 6
        %v2791 = vrot.slane %v2439, 6
        %v2792 = vrot.slane %v2440, 6
        %v2793 = vrot.slane %v2441, 6
        %v2794 = vrot.slane %v2442, 6
        %v2795 = vrot.slane %v2443, 6
        %v2796 = vrot.slane %v2444, 6
        %v2797 = vrot.slane %v2445, 6
        %2798 = vrot.lane.b32.xlu0 %v2782, 96
        %v2799 = vpop.permute.xlu0 %2798
        %2800 = vrot.lane.b32.xlu0 %v2783, 96
        %v2801 = vpop.permute.xlu0 %2800
        %2802 = vrot.lane.b32.xlu0 %v2784, 96
        %v2803 = vpop.permute.xlu0 %2802
        %2804 = vrot.lane.b32.xlu0 %v2785, 96
        %v2805 = vpop.permute.xlu0 %2804
        %2806 = vrot.lane.b32.xlu0 %v2786, 96
        %v2807 = vpop.permute.xlu0 %2806
        %2808 = vrot.lane.b32.xlu0 %v2787, 96
        %v2809 = vpop.permute.xlu0 %2808
        %2810 = vrot.lane.b32.xlu0 %v2788, 96
        %v2811 = vpop.permute.xlu0 %2810
        %2812 = vrot.lane.b32.xlu0 %v2789, 96
        %v2813 = vpop.permute.xlu0 %2812
        %2814 = vrot.lane.b32.xlu0 %v2790, 96
        %v2815 = vpop.permute.xlu0 %2814
        %2816 = vrot.lane.b32.xlu0 %v2791, 96
        %v2817 = vpop.permute.xlu0 %2816
        %2818 = vrot.lane.b32.xlu0 %v2792, 96
        %v2819 = vpop.permute.xlu0 %2818
        %2820 = vrot.lane.b32.xlu0 %v2793, 96
        %v2821 = vpop.permute.xlu0 %2820
        %2822 = vrot.lane.b32.xlu0 %v2794, 96
        %v2823 = vpop.permute.xlu0 %2822
        %2824 = vrot.lane.b32.xlu0 %v2795, 96
        %v2825 = vpop.permute.xlu0 %2824
        %2826 = vrot.lane.b32.xlu0 %v2796, 96
        %v2827 = vpop.permute.xlu0 %2826
        %2828 = vrot.lane.b32.xlu0 %v2797, 96
        %v2829 = vpop.permute.xlu0 %2828
        %v2846 = vrot.slane %v2430, 7
        %v2847 = vrot.slane %v2431, 7
        %v2848 = vrot.slane %v2432, 7
        %v2849 = vrot.slane %v2433, 7
        %v2850 = vrot.slane %v2434, 7
        %v2851 = vrot.slane %v2435, 7
        %v2852 = vrot.slane %v2436, 7
        %v2853 = vrot.slane %v2437, 7
        %v2854 = vrot.slane %v2438, 7
        %v2855 = vrot.slane %v2439, 7
        %v2856 = vrot.slane %v2440, 7
        %v2857 = vrot.slane %v2441, 7
        %v2858 = vrot.slane %v2442, 7
        %v2859 = vrot.slane %v2443, 7
        %v2860 = vrot.slane %v2444, 7
        %v2861 = vrot.slane %v2445, 7
        %2862 = vrot.lane.b32.xlu0 %v2846, 112
        %v2863 = vpop.permute.xlu0 %2862
        %2864 = vrot.lane.b32.xlu0 %v2847, 112
        %v2865 = vpop.permute.xlu0 %2864
        %2866 = vrot.lane.b32.xlu0 %v2848, 112
        %v2867 = vpop.permute.xlu0 %2866
        %2868 = vrot.lane.b32.xlu0 %v2849, 112
        %v2869 = vpop.permute.xlu0 %2868
        %2870 = vrot.lane.b32.xlu0 %v2850, 112
        %v2871 = vpop.permute.xlu0 %2870
        %2872 = vrot.lane.b32.xlu0 %v2851, 112
        %v2873 = vpop.permute.xlu0 %2872
        %2874 = vrot.lane.b32.xlu0 %v2852, 112
        %v2875 = vpop.permute.xlu0 %2874
        %2876 = vrot.lane.b32.xlu0 %v2853, 112
        %v2877 = vpop.permute.xlu0 %2876
        %2878 = vrot.lane.b32.xlu0 %v2854, 112
        %v2879 = vpop.permute.xlu0 %2878
        %2880 = vrot.lane.b32.xlu0 %v2855, 112
        %v2881 = vpop.permute.xlu0 %2880
        %2882 = vrot.lane.b32.xlu0 %v2856, 112
        %v2883 = vpop.permute.xlu0 %2882
        %2884 = vrot.lane.b32.xlu0 %v2857, 112
        %v2885 = vpop.permute.xlu0 %2884
        %2886 = vrot.lane.b32.xlu0 %v2858, 112
        %v2887 = vpop.permute.xlu0 %2886
        %2888 = vrot.lane.b32.xlu0 %v2859, 112
        %v2889 = vpop.permute.xlu0 %2888
        %2890 = vrot.lane.b32.xlu0 %v2860, 112
        %v2891 = vpop.permute.xlu0 %2890
        %2892 = vrot.lane.b32.xlu0 %v2861, 112
        %v2893 = vpop.permute.xlu0 %2892
        %v2910 = vsel %vm399, %v2430, %v2479
        %v2911 = vsel %vm399, %v2431, %v2481
        %v2912 = vsel %vm399, %v2432, %v2483
        %v2913 = vsel %vm399, %v2433, %v2485
        %v2914 = vsel %vm399, %v2434, %v2487
        %v2915 = vsel %vm399, %v2435, %v2489
        %v2916 = vsel %vm399, %v2436, %v2491
        %v2917 = vsel %vm399, %v2437, %v2493
        %v2918 = vsel %vm399, %v2438, %v2495
        %v2919 = vsel %vm399, %v2439, %v2497
        %v2920 = vsel %vm399, %v2440, %v2499
        %v2921 = vsel %vm399, %v2441, %v2501
        %v2922 = vsel %vm399, %v2442, %v2503
        %v2923 = vsel %vm399, %v2443, %v2505
        %v2924 = vsel %vm399, %v2444, %v2507
        %v2925 = vsel %vm399, %v2445, %v2509
        %vm2926 = vcmask 261120
        %v2927 = vsel %vm2926, %v2910, %v2543
        %v2928 = vsel %vm2926, %v2911, %v2545
        %v2929 = vsel %vm2926, %v2912, %v2547
        %v2930 = vsel %vm2926, %v2913, %v2549
        %v2931 = vsel %vm2926, %v2914, %v2551
        %v2932 = vsel %vm2926, %v2915, %v2553
        %v2933 = vsel %vm2926, %v2916, %v2555
        %v2934 = vsel %vm2926, %v2917, %v2557
        %v2935 = vsel %vm2926, %v2918, %v2559
        %v2936 = vsel %vm2926, %v2919, %v2561
        %v2937 = vsel %vm2926, %v2920, %v2563
        %v2938 = vsel %vm2926, %v2921, %v2565
        %v2939 = vsel %vm2926, %v2922, %v2567
        %v2940 = vsel %vm2926, %v2923, %v2569
        %v2941 = vsel %vm2926, %v2924, %v2571
        %v2942 = vsel %vm2926, %v2925, %v2573
        %vm2943 = vcmask 392192
        %v2944 = vsel %vm2943, %v2927, %v2607
        %v2945 = vsel %vm2943, %v2928, %v2609
        %v2946 = vsel %vm2943, %v2929, %v2611
        %v2947 = vsel %vm2943, %v2930, %v2613
        %v2948 = vsel %vm2943, %v2931, %v2615
        %v2949 = vsel %vm2943, %v2932, %v2617
        %v2950 = vsel %vm2943, %v2933, %v2619
        %v2951 = vsel %vm2943, %v2934, %v2621
        %v2952 = vsel %vm2943, %v2935, %v2623
        %v2953 = vsel %vm2943, %v2936, %v2625
        %v2954 = vsel %vm2943, %v2937, %v2627
        %v2955 = vsel %vm2943, %v2938, %v2629
        %v2956 = vsel %vm2943, %v2939, %v2631
        %v2957 = vsel %vm2943, %v2940, %v2633
        %v2958 = vsel %vm2943, %v2941, %v2635
        %v2959 = vsel %vm2943, %v2942, %v2637
        %vm2960 = vcmask 523264
        %v2961 = vsel %vm2960, %v2944, %v2671
        %v2962 = vsel %vm2960, %v2945, %v2673
        %v2963 = vsel %vm2960, %v2946, %v2675
        %v2964 = vsel %vm2960, %v2947, %v2677
        %v2965 = vsel %vm2960, %v2948, %v2679
        %v2966 = vsel %vm2960, %v2949, %v2681
        %v2967 = vsel %vm2960, %v2950, %v2683
        %v2968 = vsel %vm2960, %v2951, %v2685
        %v2969 = vsel %vm2960, %v2952, %v2687
        %v2970 = vsel %vm2960, %v2953, %v2689
        %v2971 = vsel %vm2960, %v2954, %v2691
        %v2972 = vsel %vm2960, %v2955, %v2693
        %v2973 = vsel %vm2960, %v2956, %v2695
        %v2974 = vsel %vm2960, %v2957, %v2697
        %v2975 = vsel %vm2960, %v2958, %v2699
        %v2976 = vsel %vm2960, %v2959, %v2701
        %vm2977 = vcmask 654336
        %v2978 = vsel %vm2977, %v2961, %v2735
        %v2979 = vsel %vm2977, %v2962, %v2737
        %v2980 = vsel %vm2977, %v2963, %v2739
        %v2981 = vsel %vm2977, %v2964, %v2741
        %v2982 = vsel %vm2977, %v2965, %v2743
        %v2983 = vsel %vm2977, %v2966, %v2745
        %v2984 = vsel %vm2977, %v2967, %v2747
        %v2985 = vsel %vm2977, %v2968, %v2749
        %v2986 = vsel %vm2977, %v2969, %v2751
        %v2987 = vsel %vm2977, %v2970, %v2753
        %v2988 = vsel %vm2977, %v2971, %v2755
        %v2989 = vsel %vm2977, %v2972, %v2757
        %v2990 = vsel %vm2977, %v2973, %v2759
        %v2991 = vsel %vm2977, %v2974, %v2761
        %v2992 = vsel %vm2977, %v2975, %v2763
        %v2993 = vsel %vm2977, %v2976, %v2765
        %vm2994 = vcmask 785408
        %v2995 = vsel %vm2994, %v2978, %v2799
        %v2996 = vsel %vm2994, %v2979, %v2801
        %v2997 = vsel %vm2994, %v2980, %v2803
        %v2998 = vsel %vm2994, %v2981, %v2805
        %v2999 = vsel %vm2994, %v2982, %v2807
        %v3000 = vsel %vm2994, %v2983, %v2809
        %v3001 = vsel %vm2994, %v2984, %v2811
        %v3002 = vsel %vm2994, %v2985, %v2813
        %v3003 = vsel %vm2994, %v2986, %v2815
        %v3004 = vsel %vm2994, %v2987, %v2817
        %v3005 = vsel %vm2994, %v2988, %v2819
        %v3006 = vsel %vm2994, %v2989, %v2821
        %v3007 = vsel %vm2994, %v2990, %v2823
        %v3008 = vsel %vm2994, %v2991, %v2825
        %v3009 = vsel %vm2994, %v2992, %v2827
        %v3010 = vsel %vm2994, %v2993, %v2829
        %vm3011 = vcmask 916480
        %v3012 = vsel %vm3011, %v2995, %v2863
        %v3013 = vsel %vm3011, %v2996, %v2865
        %v3014 = vsel %vm3011, %v2997, %v2867
        %v3015 = vsel %vm3011, %v2998, %v2869
        %v3016 = vsel %vm3011, %v2999, %v2871
        %v3017 = vsel %vm3011, %v3000, %v2873
        %v3018 = vsel %vm3011, %v3001, %v2875
        %v3019 = vsel %vm3011, %v3002, %v2877
        %v3020 = vsel %vm3011, %v3003, %v2879
        %v3021 = vsel %vm3011, %v3004, %v2881
        %v3022 = vsel %vm3011, %v3005, %v2883
        %v3023 = vsel %vm3011, %v3006, %v2885
        %v3024 = vsel %vm3011, %v3007, %v2887
        %v3025 = vsel %vm3011, %v3008, %v2889
        %v3026 = vsel %vm3011, %v3009, %v2891
        %v3027 = vsel %vm3011, %v3010, %v2893
        %v3028 = vld [vmem:[%s7] sm:$0x1]
        %v3029 = vmul.f32 %v3012, %v3028
        %v3030 = vmul.f32 %v3013, %v3028
        %v3031 = vmul.f32 %v3014, %v3028
        %v3032 = vmul.f32 %v3015, %v3028
        %v3033 = vmul.f32 %v3016, %v3028
        %v3034 = vmul.f32 %v3017, %v3028
        %v3035 = vmul.f32 %v3018, %v3028
        %v3036 = vmul.f32 %v3019, %v3028
        %v3037 = vmul.f32 %v3020, %v3028
        %v3038 = vmul.f32 %v3021, %v3028
        %v3039 = vmul.f32 %v3022, %v3028
        %v3040 = vmul.f32 %v3023, %v3028
        %v3041 = vmul.f32 %v3024, %v3028
        %v3042 = vmul.f32 %v3025, %v3028
        %v3043 = vmul.f32 %v3026, %v3028
        %v3044 = vmul.f32 %v3027, %v3028
        %v3045 = vld [vmem:[%s8] sm:$0x1]
        %v3046 = vadd.f32 %v3029, %v3045
        %v3047 = vadd.f32 %v3030, %v3045
        %v3048 = vadd.f32 %v3031, %v3045
        %v3049 = vadd.f32 %v3032, %v3045
        %v3050 = vadd.f32 %v3033, %v3045
        %v3051 = vadd.f32 %v3034, %v3045
        %v3052 = vadd.f32 %v3035, %v3045
        %v3053 = vadd.f32 %v3036, %v3045
        %v3054 = vadd.f32 %v3037, %v3045
        %v3055 = vadd.f32 %v3038, %v3045
        %v3056 = vadd.f32 %v3039, %v3045
        %v3057 = vadd.f32 %v3040, %v3045
        %v3058 = vadd.f32 %v3041, %v3045
        %v3059 = vadd.f32 %v3042, %v3045
        %v3060 = vadd.f32 %v3043, %v3045
        %v3061 = vadd.f32 %v3044, %v3045
        %3062 = vst [vmem:[%s342] sm:$0x1] %v3046
        %3063 = vst [vmem:[%s342 + $0x1] sm:$0x1] %v3047
        %3064 = vst [vmem:[%s342 + $0x2] sm:$0x1] %v3048
        %3065 = vst [vmem:[%s342 + $0x3] sm:$0x1] %v3049
        %3066 = vst [vmem:[%s342 + $0x4] sm:$0x1] %v3050
        %3067 = vst [vmem:[%s342 + $0x5] sm:$0x1] %v3051
        %3068 = vst [vmem:[%s342 + $0x6] sm:$0x1] %v3052
        %3069 = vst [vmem:[%s342 + $0x7] sm:$0x1] %v3053
        %3070 = vst [vmem:[%s342 + $0x8] sm:$0x1] %v3054
        %3071 = vst [vmem:[%s342 + $0x9] sm:$0x1] %v3055
        %3072 = vst [vmem:[%s342 + $0xa] sm:$0x1] %v3056
        %3073 = vst [vmem:[%s342 + $0xb] sm:$0x1] %v3057
        %3074 = vst [vmem:[%s342 + $0xc] sm:$0x1] %v3058
        %3075 = vst [vmem:[%s342 + $0xd] sm:$0x1] %v3059
        %3076 = vst [vmem:[%s342 + $0xe] sm:$0x1] %v3060
        %3077 = vst [vmem:[%s342 + $0xf] sm:$0x1] %v3061
        %s3078 = sand.u32 %s230, 1
        %s3079 = scalar_lea.sflag [#allocation3], %s3078
        %s3080 = sand.u32 %s230, 1
        %s3081 = smul.addr %s3080, 16
        %s3082 = scalar_lea.vmem [#allocation2], %s3081
        // Predicated region
        $region57: #{tpu_custom_call.1} parent=55 // pred_check
          %p3083 = pneg %p240
        $region58: #{tpu_custom_call.1} parent=55 // pred_check_branch
          %3085 = sbr.rel (%p3083) target = $region60
        $region59: #{tpu_custom_call.1} parent=55 // pred_region
          %s3086 = smul.u32 16, %s23
          %3088 = vsyncadd %s3079, 0
          %s3089 = scalar_lea.hbm %s9, %s3086
          %s3090 = sshll.u32 %s3082, 4
          %s3091 = int_to_ptr.vmem [resolvable:$true] %s3090
          %s3092 = sshll.u32 %s3089, 4
          %s3093 = int_to_ptr.hbm [resolvable:$true] %s3092
          %3098 = dma.vmem_to_hbm [thread:$0]  %s3091, 256, %s3093, %s3079, 16, 16, 1
        $region60: #{tpu_custom_call.1} parent=55 // pred_fallthru
          _
      $region56: #{tpu_custom_call.1} parent=5 // pred_fallthru
        _
      %p3099 = scmp.le.s32.totalorder 2, %s18
      // Predicated region
      $region61: #{tpu_custom_call.1} parent=5 // pred_check
        %p3100 = pneg %p3099
      $region62: #{tpu_custom_call.1} parent=5 // pred_check_branch
        %3102 = sbr.rel (%p3100) target = $region64
      $region63: #{tpu_custom_call.1} parent=5 // pred_region
        %s3103 = ssub.s32 %s18, 2
        // Predicated region
        $region65: #{tpu_custom_call.1} parent=63 // pred_check
          %p3104 = pneg %p246
        $region66: #{tpu_custom_call.1} parent=63 // pred_check_branch
          %3106 = sbr.rel (%p3104) target = $region68
        $region67: #{tpu_custom_call.1} parent=63 // pred_region
          %s3107 = sand.u32 %s231, 1
          %s3108 = scalar_lea.sflag [#allocation3], %s3107
          %s3109 = sand.u32 %s231, 1
          %s3110 = smul.addr %s3109, 16
          %s3111 = scalar_lea.vmem [#allocation2], %s3110
          %3113 = dma.done %s3108, 256
        $region68: #{tpu_custom_call.1} parent=63 // pred_fallthru
          _
      $region64: #{tpu_custom_call.1} parent=5 // pred_fallthru
        _
    $region6: #{tpu_custom_call.1} parent=1 // loop_footer
      %s22 = sadd.s32 1, %s18
    $region7: #{tpu_custom_call.1} parent=1 // loop_footer_branch
      %17 = sbr.rel target = $region3
    $region8: #{tpu_custom_call.1} parent=1 // loop_exit
      _
    %3114 = vsyncpa [#allocation3], 1
    %s3115 = scalar_lea.sflag [#allocation3], 1
    %3116 = vsyncpa %s3115, 1

</llo_original>
